<compile_context>
chip_gen: v7x
topology: tpu7x:2x2x1
jax: 0.10.0
libtpu: 0.0.40
codegen_flags: <defaults>
</compile_context>

<pallas_src>
import jax
import jax.numpy as jnp
from jax import lax
from jax.experimental import pallas as pl
from jax.experimental.pallas import tpu as pltpu

# Problem sizes (match nn.LSTM(input_size=1, hidden_size=30, num_layers=2) + fc(30->1))
INPUT = 1
HIDDEN = 30
NUM_LAYERS = 2
OUTPUT = 1
BATCH = 2
SEQ = 8

GP = 32            # per-gate lane width (dense packing: HIDDEN=30 padded to 32)
GT = 4 * GP        # 128: all 4 gates (i|f|g|o) packed into one lane tile
KW = 2 * GP        # 64:  fused contraction rows = [h1 | h2_prev]
PROW = 8           # rows 0..7 of the params/state slab hold parameter rows


# --------------------------------------------------------------------------------------
# Kernel
# --------------------------------------------------------------------------------------
def lstm_kernel(x_ref, vec_ref, wb_ref, out_ref, xb_ref):
    T, B, _ = x_ref.shape

    # ---- hoisted parameter loads ------------------------------------------------------
    wb_h1 = wb_ref[0:GP, :]              # (GP, 2*GT): h1 -> [layer-1 gates | layer-0 rec(t+1)]
    wb_h2 = wb_ref[GP:2 * GP, 0:GT]      # (GP, GT)  : h2_prev -> layer-1 gates
    bias1 = jnp.broadcast_to(vec_ref[2:3, :], (B, GT))

    # ---- initial state (dense 32-lane layout, valid lanes [0, HIDDEN)) ----------------
    h1 = vec_ref[PROW + 0 * B:PROW + 1 * B, 0:GP]
    c1 = vec_ref[PROW + 1 * B:PROW + 2 * B, 0:GP]
    h2 = vec_ref[PROW + 2 * B:PROW + 3 * B, 0:GP]
    c2 = vec_ref[PROW + 3 * B:PROW + 4 * B, 0:GP]

    # ---- layer-0 input term for ALL timesteps (carry-independent, off the serial chain)
    # xb[t] = x_t * W_ih0_row + (b_ih0 + b_hh0), gate-packed.
    xb_ref[...] = x_ref[...] * vec_ref[0:1, :][None] + vec_ref[1:2, :][None]

    def activate(gates, c_prev):
        # gates: (B, GT), gate k at lanes [k*GP, k*GP+HIDDEN).  One sigmoid + one tanh
        # over the whole packed tile (EUP), then static 32-lane slices (XLU) align
        # i/f/g/o onto lanes [0, GP).  Padding lanes stay exactly zero.
        sg = jax.nn.sigmoid(gates)
        th = jnp.tanh(gates)
        i = sg[:, 0 * GP:1 * GP]
        f = sg[:, 1 * GP:2 * GP]
        g = th[:, 2 * GP:3 * GP]
        o = sg[:, 3 * GP:4 * GP]
        c = f * c_prev + i * g
        h = o * jnp.tanh(c)
        return h, c

    # rec0(t) = h1(t-1) @ Whh0 lives in the right half of the fused weight; seed for t=0.
    rec0 = jnp.dot(h1, wb_h1, preferred_element_type=jnp.float32)[:, GT:]

    def step(t, carry):
        c1, h2, c2, rec0 = carry
        # Layer 0: input term precomputed, recurrent term carried from previous step's dot.
        h1, c1 = activate(xb_ref[t] + rec0, c1)
        # Fused dot on the critical path: left half = layer-1 gate pre-activations for
        # step t, right half = layer-0 recurrent pre-activation for step t+1.  The h2
        # dot only depends on step t-1, so it overlaps with activate() above.
        d1 = jnp.dot(h1, wb_h1, preferred_element_type=jnp.float32)   # (B, 2*GT)
        d2 = jnp.dot(h2, wb_h2, preferred_element_type=jnp.float32)   # (B, GT)
        h2, c2 = activate(d1[:, 0:GT] + d2 + bias1, c2)
        return c1, h2, c2, d1[:, GT:]

    _, h2, _, _ = lax.fori_loop(0, T, step, (c1, h2, c2, rec0), unroll=True)

    # Final Linear(HIDDEN -> 1): VPU multiply + lane reduction (no lane-sparse N=1 matmul).
    wfc = vec_ref[3:4, 0:GP]           # (1, GP), zeros beyond HIDDEN
    bfc = vec_ref[4:5, 0:1]            # (1, 1)
    out_ref[...] = jnp.sum(h2 * wfc, axis=1, keepdims=True) + bfc


# --------------------------------------------------------------------------------------
# Host-side parameter packing (pure layout plumbing)
# --------------------------------------------------------------------------------------
def _pack_gate_cols(m):
    """m: (4*HIDDEN, D) PyTorch gate-major weight -> (D, GT), transposed, with gate k's
    HIDDEN columns placed densely at lanes [k*GP, k*GP + HIDDEN)."""
    d = m.shape[1]
    out = jnp.zeros((d, GT), jnp.float32)
    for k in range(4):
        out = out.at[:, k * GP:k * GP + HIDDEN].set(m[k * HIDDEN:(k + 1) * HIDDEN, :].T)
    return out


def _pack_gate_vec(v):
    """v: (4*HIDDEN,) -> (1, GT) with gate k at lanes [k*GP, k*GP + HIDDEN)."""
    return _pack_gate_cols(v.reshape(4 * HIDDEN, 1))


def lstm_forward(x, hidden, params):
    """x: (B, T, INPUT) float32; hidden: (h0, c0) each (NUM_LAYERS, B, HIDDEN)."""
    (wih0, whh0, bih0, bhh0, wih1, whh1, bih1, bhh1, wfc, bfc) = params
    h0, c0 = hidden
    B, T, D = x.shape
    assert D == INPUT

    x_tm = jnp.transpose(x, (1, 0, 2)).astype(jnp.float32)        # time-major (T, B, 1)

    # Fused recurrent weight (KW, 2*GT) = (64, 256):
    #   rows [0, HIDDEN)       <- h1(t)   : [ Wih1 (layer-1 gates) | Whh0 (layer-0 rec, t+1) ]
    #   rows [GP, GP+HIDDEN)   <- h2(t-1) : [ Whh1 (layer-1 gates) | 0 ]
    wb = jnp.zeros((KW, 2 * GT), jnp.float32)
    wb = wb.at[0:HIDDEN, 0:GT].set(_pack_gate_cols(wih1))
    wb = wb.at[0:HIDDEN, GT:2 * GT].set(_pack_gate_cols(whh0))
    wb = wb.at[GP:GP + HIDDEN, 0:GT].set(_pack_gate_cols(whh1))

    # Params + initial-state slab (PROW + 4*B, GT):
    #   row 0: W_ih0 row (INPUT == 1), row 1: b_ih0 + b_hh0, row 2: b_ih1 + b_hh1,
    #   row 3: fc weight (lanes [0, HIDDEN)), row 4: fc bias,
    #   rows PROW..: initial h1, c1, h2, c2 (B rows each, lanes [0, HIDDEN)).
    nrows = PROW + 4 * B
    vecs = jnp.zeros((nrows, GT), jnp.float32)
    vecs = vecs.at[0:1].set(_pack_gate_cols(wih0))
    vecs = vecs.at[1:2].set(_pack_gate_vec(bih0 + bhh0))
    vecs = vecs.at[2:3].set(_pack_gate_vec(bih1 + bhh1))
    vecs = vecs.at[3, 0:HIDDEN].set(wfc[0])
    vecs = vecs.at[4, :].set(bfc[0])
    vecs = vecs.at[PROW + 0 * B:PROW + 1 * B, 0:HIDDEN].set(h0[0])
    vecs = vecs.at[PROW + 1 * B:PROW + 2 * B, 0:HIDDEN].set(c0[0])
    vecs = vecs.at[PROW + 2 * B:PROW + 3 * B, 0:HIDDEN].set(h0[1])
    vecs = vecs.at[PROW + 3 * B:PROW + 4 * B, 0:HIDDEN].set(c0[1])

    kernel = pl.pallas_call(
        lstm_kernel,
        out_shape=jax.ShapeDtypeStruct((B, OUTPUT), jnp.float32),
        grid=(1,),
        in_specs=[
            pl.BlockSpec((T, B, INPUT), lambda i: (0, 0, 0)),     # x, time-major
            pl.BlockSpec((nrows, GT), lambda i: (0, 0)),          # params + initial state
            pl.BlockSpec((KW, 2 * GT), lambda i: (0, 0)),         # fused recurrent weight
        ],
        out_specs=pl.BlockSpec((B, OUTPUT), lambda i: (0, 0)),
        scratch_shapes=[pltpu.VMEM((T, B, GT), jnp.float32)],     # precomputed x*W_ih0 + b0
        compiler_params=pltpu.CompilerParams(dimension_semantics=("arbitrary",)),
    )
    return kernel(x_tm, vecs, wb)


# --------------------------------------------------------------------------------------
# Pure-JAX reference (torch.nn.LSTM semantics) for validation
# --------------------------------------------------------------------------------------
def lstm_reference(x, hidden, params):
    (wih0, whh0, bih0, bhh0, wih1, whh1, bih1, bhh1, wfc, bfc) = params
    h0, c0 = hidden

    def cell(x_t, h, c, wih, whh, bih, bhh):
        gates = (jnp.dot(x_t, wih.T, preferred_element_type=jnp.float32)
                 + jnp.dot(h, whh.T, preferred_element_type=jnp.float32)
                 + bih + bhh)
        i = jax.nn.sigmoid(gates[:, 0 * HIDDEN:1 * HIDDEN])
        f = jax.nn.sigmoid(gates[:, 1 * HIDDEN:2 * HIDDEN])
        g = jnp.tanh(gates[:, 2 * HIDDEN:3 * HIDDEN])
        o = jax.nn.sigmoid(gates[:, 3 * HIDDEN:4 * HIDDEN])
        c = f * c + i * g
        h = o * jnp.tanh(c)
        return h, c

    h1, c1, h2, c2 = h0[0], c0[0], h0[1], c0[1]
    for t in range(x.shape[1]):
        x_t = x[:, t, :]
        h1, c1 = cell(x_t, h1, c1, wih0, whh0, bih0, bhh0)
        h2, c2 = cell(h1, h2, c2, wih1, whh1, bih1, bhh1)
    return jnp.dot(h2, wfc.T, preferred_element_type=jnp.float32) + bfc


def init_params(key):
    """Uniform(-k, k) with k = 1/sqrt(HIDDEN), like PyTorch's default LSTM init."""
    k = 1.0 / jnp.sqrt(jnp.float32(HIDDEN))
    keys = jax.random.split(key, 10)
    u = lambda kk, shape: jax.random.uniform(kk, shape, jnp.float32, -k, k)
    wih0 = u(keys[0], (4 * HIDDEN, INPUT))
    whh0 = u(keys[1], (4 * HIDDEN, HIDDEN))
    bih0 = u(keys[2], (4 * HIDDEN,))
    bhh0 = u(keys[3], (4 * HIDDEN,))
    wih1 = u(keys[4], (4 * HIDDEN, HIDDEN))
    whh1 = u(keys[5], (4 * HIDDEN, HIDDEN))
    bih1 = u(keys[6], (4 * HIDDEN,))
    bhh1 = u(keys[7], (4 * HIDDEN,))
    wfc = u(keys[8], (OUTPUT, HIDDEN))
    bfc = u(keys[9], (OUTPUT,))
    return (wih0, whh0, bih0, bhh0, wih1, whh1, bih1, bhh1, wfc, bfc)


if __name__ == "__main__":
    root = jax.random.PRNGKey(0)
    k_x, k_h, k_c, k_p = jax.random.split(root, 4)

    x = jax.random.normal(k_x, (BATCH, SEQ, INPUT), jnp.float32)
    h0 = jax.random.normal(k_h, (NUM_LAYERS, BATCH, HIDDEN), jnp.float32)
    c0 = jax.random.normal(k_c, (NUM_LAYERS, BATCH, HIDDEN), jnp.float32)
    params = init_params(k_p)

    out = lstm_forward(x, (h0, c0), params)
    out = jax.block_until_ready(out)

    ref = lstm_reference(x, (h0, c0), params)
    assert out.shape == (BATCH, OUTPUT)
    assert jnp.allclose(out, ref, atol=1e-4, rtol=1e-4), (out, ref)

    print("KERNEL_OK")
</pallas_src>

<mosaic_0001>
module attributes {stable_mosaic.version = 11 : i64} {
  func.func @lstm_kernel(%arg0: i32, %arg1: memref<8x2x1xf32, #tpu.memory_space<vmem>>, %arg2: memref<16x128xf32, #tpu.memory_space<vmem>>, %arg3: memref<64x256xf32, #tpu.memory_space<vmem>>, %arg4: memref<2x1xf32, #tpu.memory_space<vmem>>, %arg5: memref<8x2x128xf32, #tpu.memory_space<vmem>>) attributes {dimension_semantics = [#tpu.dimension_semantics<arbitrary>], iteration_bounds = array<i64: 1>, scalar_prefetch = 0 : i64, scratch_operands = 1 : i64, tpu.core_type = #tpu.core_type<tc>, window_params = [{pipeline_mode = #tpu.pipeline_mode<synchronous>, transform_indices = @transform_0, window_bounds = array<i64: 8, 2, 1>}, {pipeline_mode = #tpu.pipeline_mode<synchronous>, transform_indices = @transform_1, window_bounds = array<i64: 16, 128>}, {pipeline_mode = #tpu.pipeline_mode<synchronous>, transform_indices = @transform_2, window_bounds = array<i64: 64, 256>}, {pipeline_mode = #tpu.pipeline_mode<synchronous>, transform_indices = @transform_3, window_bounds = array<i64: 2, 1>}]} {
    %c0 = arith.constant 0 : index
    %c0_0 = arith.constant 0 : index
    %0 = vector.load %arg3[%c0, %c0_0] : memref<64x256xf32, #tpu.memory_space<vmem>>, vector<32x256xf32>
    %c32 = arith.constant 32 : index
    %c0_1 = arith.constant 0 : index
    %1 = vector.load %arg3[%c32, %c0_1] : memref<64x256xf32, #tpu.memory_space<vmem>>, vector<32x128xf32>
    %c2 = arith.constant 2 : index
    %c0_2 = arith.constant 0 : index
    %2 = vector.load %arg2[%c2, %c0_2] : memref<16x128xf32, #tpu.memory_space<vmem>>, vector<1x128xf32>
    %3 = vector.shape_cast %2 : vector<1x128xf32> to vector<1x128xf32>
    %4 = vector.broadcast %3 : vector<1x128xf32> to vector<2x128xf32>
    %c8 = arith.constant 8 : index
    %c0_3 = arith.constant 0 : index
    %5 = vector.load %arg2[%c8, %c0_3] : memref<16x128xf32, #tpu.memory_space<vmem>>, vector<2x32xf32>
    %c10 = arith.constant 10 : index
    %c0_4 = arith.constant 0 : index
    %6 = vector.load %arg2[%c10, %c0_4] : memref<16x128xf32, #tpu.memory_space<vmem>>, vector<2x32xf32>
    %c12 = arith.constant 12 : index
    %c0_5 = arith.constant 0 : index
    %7 = vector.load %arg2[%c12, %c0_5] : memref<16x128xf32, #tpu.memory_space<vmem>>, vector<2x32xf32>
    %c14 = arith.constant 14 : index
    %c0_6 = arith.constant 0 : index
    %8 = vector.load %arg2[%c14, %c0_6] : memref<16x128xf32, #tpu.memory_space<vmem>>, vector<2x32xf32>
    %c0_7 = arith.constant 0 : index
    %c0_8 = arith.constant 0 : index
    %c0_9 = arith.constant 0 : index
    %9 = vector.load %arg1[%c0_7, %c0_8, %c0_9] : memref<8x2x1xf32, #tpu.memory_space<vmem>>, vector<8x2x1xf32>
    %c0_10 = arith.constant 0 : index
    %c0_11 = arith.constant 0 : index
    %10 = vector.load %arg2[%c0_10, %c0_11] : memref<16x128xf32, #tpu.memory_space<vmem>>, vector<1x128xf32>
    %11 = vector.shape_cast %10 : vector<1x128xf32> to vector<1x1x128xf32>
    %12 = vector.broadcast %9 : vector<8x2x1xf32> to vector<8x2x128xf32>
    %13 = vector.broadcast %11 : vector<1x1x128xf32> to vector<8x2x128xf32>
    %14 = arith.mulf %12, %13 : vector<8x2x128xf32>
    %c1 = arith.constant 1 : index
    %c0_12 = arith.constant 0 : index
    %15 = vector.load %arg2[%c1, %c0_12] : memref<16x128xf32, #tpu.memory_space<vmem>>, vector<1x128xf32>
    %16 = vector.shape_cast %15 : vector<1x128xf32> to vector<1x1x128xf32>
    %17 = vector.broadcast %16 : vector<1x1x128xf32> to vector<8x2x128xf32>
    %18 = arith.addf %14, %17 : vector<8x2x128xf32>
    %c0_13 = arith.constant 0 : index
    %c0_14 = arith.constant 0 : index
    %c0_15 = arith.constant 0 : index
    %19 = vector.load %arg5[%c0_13, %c0_14, %c0_15] : memref<8x2x128xf32, #tpu.memory_space<vmem>>, vector<8x2x128xf32>
    tpu.vector_store %arg5[%c0_13, %c0_14, %c0_15], %18 {strides = array<i32>} : memref<8x2x128xf32, #tpu.memory_space<vmem>>, vector<8x2x128xf32>,
    %cst = arith.constant dense<0.000000e+00> : vector<2x256xf32>
    %20 = tpu.matmul %5, %0, %cst {dimension_numbers = #tpu.dot_dimension_numbers<[1], [0], [0], [1], [0, 0, 1, 1], [], []>} : vector<2x32xf32>, vector<32x256xf32>, vector<2x256xf32> -> vector<2x256xf32>
    %21 = vector.extract_strided_slice %20 {offsets = [0, 128], sizes = [2, 128], strides = [1, 1]} : vector<2x256xf32> to vector<2x128xf32>
    %c0_i32 = arith.constant 0 : i32
    %22 = arith.index_cast %c0_i32 : i32 to index
    %c0_16 = arith.constant 0 : index
    %c0_17 = arith.constant 0 : index
    %23 = vector.load %arg5[%22, %c0_16, %c0_17] : memref<8x2x128xf32, #tpu.memory_space<vmem>>, vector<1x2x128xf32>
    %24 = vector.shape_cast %23 : vector<1x2x128xf32> to vector<2x128xf32>
    %25 = arith.addf %24, %21 : vector<2x128xf32>
    %26 = arith.negf %25 : vector<2x128xf32>
    %27 = math.exp %26 : vector<2x128xf32>
    %cst_18 = arith.constant 1.000000e+00 : f32
    %28 = vector.broadcast %cst_18 : f32 to vector<2x128xf32>
    %29 = arith.addf %28, %27 : vector<2x128xf32>
    %30 = arith.divf %28, %29 : vector<2x128xf32>
    %31 = math.tanh %25 : vector<2x128xf32>
    %32 = vector.extract_strided_slice %30 {offsets = [0, 0], sizes = [2, 32], strides = [1, 1]} : vector<2x128xf32> to vector<2x32xf32>
    %33 = vector.extract_strided_slice %30 {offsets = [0, 32], sizes = [2, 32], strides = [1, 1]} : vector<2x128xf32> to vector<2x32xf32>
    %34 = vector.extract_strided_slice %31 {offsets = [0, 64], sizes = [2, 32], strides = [1, 1]} : vector<2x128xf32> to vector<2x32xf32>
    %35 = vector.extract_strided_slice %30 {offsets = [0, 96], sizes = [2, 32], strides = [1, 1]} : vector<2x128xf32> to vector<2x32xf32>
    %36 = arith.mulf %33, %6 : vector<2x32xf32>
    %37 = arith.mulf %32, %34 : vector<2x32xf32>
    %38 = arith.addf %36, %37 : vector<2x32xf32>
    %39 = math.tanh %38 : vector<2x32xf32>
    %40 = arith.mulf %35, %39 : vector<2x32xf32>
    %cst_19 = arith.constant dense<0.000000e+00> : vector<2x256xf32>
    %41 = tpu.matmul %40, %0, %cst_19 {dimension_numbers = #tpu.dot_dimension_numbers<[1], [0], [0], [1], [0, 0, 1, 1], [], []>} : vector<2x32xf32>, vector<32x256xf32>, vector<2x256xf32> -> vector<2x256xf32>
    %cst_20 = arith.constant dense<0.000000e+00> : vector<2x128xf32>
    %42 = tpu.matmul %7, %1, %cst_20 {dimension_numbers = #tpu.dot_dimension_numbers<[1], [0], [0], [1], [0, 0, 1, 1], [], []>} : vector<2x32xf32>, vector<32x128xf32>, vector<2x128xf32> -> vector<2x128xf32>
    %43 = vector.extract_strided_slice %41 {offsets = [0, 0], sizes = [2, 128], strides = [1, 1]} : vector<2x256xf32> to vector<2x128xf32>
    %44 = arith.addf %43, %42 : vector<2x128xf32>
    %45 = arith.addf %44, %4 : vector<2x128xf32>
    %46 = arith.negf %45 : vector<2x128xf32>
    %47 = math.exp %46 : vector<2x128xf32>
    %cst_21 = arith.constant 1.000000e+00 : f32
    %48 = vector.broadcast %cst_21 : f32 to vector<2x128xf32>
    %49 = arith.addf %48, %47 : vector<2x128xf32>
    %50 = arith.divf %48, %49 : vector<2x128xf32>
    %51 = math.tanh %45 : vector<2x128xf32>
    %52 = vector.extract_strided_slice %50 {offsets = [0, 0], sizes = [2, 32], strides = [1, 1]} : vector<2x128xf32> to vector<2x32xf32>
    %53 = vector.extract_strided_slice %50 {offsets = [0, 32], sizes = [2, 32], strides = [1, 1]} : vector<2x128xf32> to vector<2x32xf32>
    %54 = vector.extract_strided_slice %51 {offsets = [0, 64], sizes = [2, 32], strides = [1, 1]} : vector<2x128xf32> to vector<2x32xf32>
    %55 = vector.extract_strided_slice %50 {offsets = [0, 96], sizes = [2, 32], strides = [1, 1]} : vector<2x128xf32> to vector<2x32xf32>
    %56 = arith.mulf %53, %8 : vector<2x32xf32>
    %57 = arith.mulf %52, %54 : vector<2x32xf32>
    %58 = arith.addf %56, %57 : vector<2x32xf32>
    %59 = math.tanh %58 : vector<2x32xf32>
    %60 = arith.mulf %55, %59 : vector<2x32xf32>
    %61 = vector.extract_strided_slice %41 {offsets = [0, 128], sizes = [2, 128], strides = [1, 1]} : vector<2x256xf32> to vector<2x128xf32>
    %c1_i32 = arith.constant 1 : i32
    %62 = arith.index_cast %c1_i32 : i32 to index
    %c0_22 = arith.constant 0 : index
    %c0_23 = arith.constant 0 : index
    %63 = vector.load %arg5[%62, %c0_22, %c0_23] : memref<8x2x128xf32, #tpu.memory_space<vmem>>, vector<1x2x128xf32>
    %64 = vector.shape_cast %63 : vector<1x2x128xf32> to vector<2x128xf32>
    %65 = arith.addf %64, %61 : vector<2x128xf32>
    %66 = arith.negf %65 : vector<2x128xf32>
    %67 = math.exp %66 : vector<2x128xf32>
    %cst_24 = arith.constant 1.000000e+00 : f32
    %68 = vector.broadcast %cst_24 : f32 to vector<2x128xf32>
    %69 = arith.addf %68, %67 : vector<2x128xf32>
    %70 = arith.divf %68, %69 : vector<2x128xf32>
    %71 = math.tanh %65 : vector<2x128xf32>
    %72 = vector.extract_strided_slice %70 {offsets = [0, 0], sizes = [2, 32], strides = [1, 1]} : vector<2x128xf32> to vector<2x32xf32>
    %73 = vector.extract_strided_slice %70 {offsets = [0, 32], sizes = [2, 32], strides = [1, 1]} : vector<2x128xf32> to vector<2x32xf32>
    %74 = vector.extract_strided_slice %71 {offsets = [0, 64], sizes = [2, 32], strides = [1, 1]} : vector<2x128xf32> to vector<2x32xf32>
    %75 = vector.extract_strided_slice %70 {offsets = [0, 96], sizes = [2, 32], strides = [1, 1]} : vector<2x128xf32> to vector<2x32xf32>
    %76 = arith.mulf %73, %38 : vector<2x32xf32>
    %77 = arith.mulf %72, %74 : vector<2x32xf32>
    %78 = arith.addf %76, %77 : vector<2x32xf32>
    %79 = math.tanh %78 : vector<2x32xf32>
    %80 = arith.mulf %75, %79 : vector<2x32xf32>
    %cst_25 = arith.constant dense<0.000000e+00> : vector<2x256xf32>
    %81 = tpu.matmul %80, %0, %cst_25 {dimension_numbers = #tpu.dot_dimension_numbers<[1], [0], [0], [1], [0, 0, 1, 1], [], []>} : vector<2x32xf32>, vector<32x256xf32>, vector<2x256xf32> -> vector<2x256xf32>
    %cst_26 = arith.constant dense<0.000000e+00> : vector<2x128xf32>
    %82 = tpu.matmul %60, %1, %cst_26 {dimension_numbers = #tpu.dot_dimension_numbers<[1], [0], [0], [1], [0, 0, 1, 1], [], []>} : vector<2x32xf32>, vector<32x128xf32>, vector<2x128xf32> -> vector<2x128xf32>
    %83 = vector.extract_strided_slice %81 {offsets = [0, 0], sizes = [2, 128], strides = [1, 1]} : vector<2x256xf32> to vector<2x128xf32>
    %84 = arith.addf %83, %82 : vector<2x128xf32>
    %85 = arith.addf %84, %4 : vector<2x128xf32>
    %86 = arith.negf %85 : vector<2x128xf32>
    %87 = math.exp %86 : vector<2x128xf32>
    %cst_27 = arith.constant 1.000000e+00 : f32
    %88 = vector.broadcast %cst_27 : f32 to vector<2x128xf32>
    %89 = arith.addf %88, %87 : vector<2x128xf32>
    %90 = arith.divf %88, %89 : vector<2x128xf32>
    %91 = math.tanh %85 : vector<2x128xf32>
    %92 = vector.extract_strided_slice %90 {offsets = [0, 0], sizes = [2, 32], strides = [1, 1]} : vector<2x128xf32> to vector<2x32xf32>
    %93 = vector.extract_strided_slice %90 {offsets = [0, 32], sizes = [2, 32], strides = [1, 1]} : vector<2x128xf32> to vector<2x32xf32>
    %94 = vector.extract_strided_slice %91 {offsets = [0, 64], sizes = [2, 32], strides = [1, 1]} : vector<2x128xf32> to vector<2x32xf32>
    %95 = vector.extract_strided_slice %90 {offsets = [0, 96], sizes = [2, 32], strides = [1, 1]} : vector<2x128xf32> to vector<2x32xf32>
    %96 = arith.mulf %93, %58 : vector<2x32xf32>
    %97 = arith.mulf %92, %94 : vector<2x32xf32>
    %98 = arith.addf %96, %97 : vector<2x32xf32>
    %99 = math.tanh %98 : vector<2x32xf32>
    %100 = arith.mulf %95, %99 : vector<2x32xf32>
    %101 = vector.extract_strided_slice %81 {offsets = [0, 128], sizes = [2, 128], strides = [1, 1]} : vector<2x256xf32> to vector<2x128xf32>
    %c2_i32 = arith.constant 2 : i32
    %102 = arith.index_cast %c2_i32 : i32 to index
    %c0_28 = arith.constant 0 : index
    %c0_29 = arith.constant 0 : index
    %103 = vector.load %arg5[%102, %c0_28, %c0_29] : memref<8x2x128xf32, #tpu.memory_space<vmem>>, vector<1x2x128xf32>
    %104 = vector.shape_cast %103 : vector<1x2x128xf32> to vector<2x128xf32>
    %105 = arith.addf %104, %101 : vector<2x128xf32>
    %106 = arith.negf %105 : vector<2x128xf32>
    %107 = math.exp %106 : vector<2x128xf32>
    %cst_30 = arith.constant 1.000000e+00 : f32
    %108 = vector.broadcast %cst_30 : f32 to vector<2x128xf32>
    %109 = arith.addf %108, %107 : vector<2x128xf32>
    %110 = arith.divf %108, %109 : vector<2x128xf32>
    %111 = math.tanh %105 : vector<2x128xf32>
    %112 = vector.extract_strided_slice %110 {offsets = [0, 0], sizes = [2, 32], strides = [1, 1]} : vector<2x128xf32> to vector<2x32xf32>
    %113 = vector.extract_strided_slice %110 {offsets = [0, 32], sizes = [2, 32], strides = [1, 1]} : vector<2x128xf32> to vector<2x32xf32>
    %114 = vector.extract_strided_slice %111 {offsets = [0, 64], sizes = [2, 32], strides = [1, 1]} : vector<2x128xf32> to vector<2x32xf32>
    %115 = vector.extract_strided_slice %110 {offsets = [0, 96], sizes = [2, 32], strides = [1, 1]} : vector<2x128xf32> to vector<2x32xf32>
    %116 = arith.mulf %113, %78 : vector<2x32xf32>
    %117 = arith.mulf %112, %114 : vector<2x32xf32>
    %118 = arith.addf %116, %117 : vector<2x32xf32>
    %119 = math.tanh %118 : vector<2x32xf32>
    %120 = arith.mulf %115, %119 : vector<2x32xf32>
    %cst_31 = arith.constant dense<0.000000e+00> : vector<2x256xf32>
    %121 = tpu.matmul %120, %0, %cst_31 {dimension_numbers = #tpu.dot_dimension_numbers<[1], [0], [0], [1], [0, 0, 1, 1], [], []>} : vector<2x32xf32>, vector<32x256xf32>, vector<2x256xf32> -> vector<2x256xf32>
    %cst_32 = arith.constant dense<0.000000e+00> : vector<2x128xf32>
    %122 = tpu.matmul %100, %1, %cst_32 {dimension_numbers = #tpu.dot_dimension_numbers<[1], [0], [0], [1], [0, 0, 1, 1], [], []>} : vector<2x32xf32>, vector<32x128xf32>, vector<2x128xf32> -> vector<2x128xf32>
    %123 = vector.extract_strided_slice %121 {offsets = [0, 0], sizes = [2, 128], strides = [1, 1]} : vector<2x256xf32> to vector<2x128xf32>
    %124 = arith.addf %123, %122 : vector<2x128xf32>
    %125 = arith.addf %124, %4 : vector<2x128xf32>
    %126 = arith.negf %125 : vector<2x128xf32>
    %127 = math.exp %126 : vector<2x128xf32>
    %cst_33 = arith.constant 1.000000e+00 : f32
    %128 = vector.broadcast %cst_33 : f32 to vector<2x128xf32>
    %129 = arith.addf %128, %127 : vector<2x128xf32>
    %130 = arith.divf %128, %129 : vector<2x128xf32>
    %131 = math.tanh %125 : vector<2x128xf32>
    %132 = vector.extract_strided_slice %130 {offsets = [0, 0], sizes = [2, 32], strides = [1, 1]} : vector<2x128xf32> to vector<2x32xf32>
    %133 = vector.extract_strided_slice %130 {offsets = [0, 32], sizes = [2, 32], strides = [1, 1]} : vector<2x128xf32> to vector<2x32xf32>
    %134 = vector.extract_strided_slice %131 {offsets = [0, 64], sizes = [2, 32], strides = [1, 1]} : vector<2x128xf32> to vector<2x32xf32>
    %135 = vector.extract_strided_slice %130 {offsets = [0, 96], sizes = [2, 32], strides = [1, 1]} : vector<2x128xf32> to vector<2x32xf32>
    %136 = arith.mulf %133, %98 : vector<2x32xf32>
    %137 = arith.mulf %132, %134 : vector<2x32xf32>
    %138 = arith.addf %136, %137 : vector<2x32xf32>
    %139 = math.tanh %138 : vector<2x32xf32>
    %140 = arith.mulf %135, %139 : vector<2x32xf32>
    %141 = vector.extract_strided_slice %121 {offsets = [0, 128], sizes = [2, 128], strides = [1, 1]} : vector<2x256xf32> to vector<2x128xf32>
    %c3_i32 = arith.constant 3 : i32
    %142 = arith.index_cast %c3_i32 : i32 to index
    %c0_34 = arith.constant 0 : index
    %c0_35 = arith.constant 0 : index
    %143 = vector.load %arg5[%142, %c0_34, %c0_35] : memref<8x2x128xf32, #tpu.memory_space<vmem>>, vector<1x2x128xf32>
    %144 = vector.shape_cast %143 : vector<1x2x128xf32> to vector<2x128xf32>
    %145 = arith.addf %144, %141 : vector<2x128xf32>
    %146 = arith.negf %145 : vector<2x128xf32>
    %147 = math.exp %146 : vector<2x128xf32>
    %cst_36 = arith.constant 1.000000e+00 : f32
    %148 = vector.broadcast %cst_36 : f32 to vector<2x128xf32>
    %149 = arith.addf %148, %147 : vector<2x128xf32>
    %150 = arith.divf %148, %149 : vector<2x128xf32>
    %151 = math.tanh %145 : vector<2x128xf32>
    %152 = vector.extract_strided_slice %150 {offsets = [0, 0], sizes = [2, 32], strides = [1, 1]} : vector<2x128xf32> to vector<2x32xf32>
    %153 = vector.extract_strided_slice %150 {offsets = [0, 32], sizes = [2, 32], strides = [1, 1]} : vector<2x128xf32> to vector<2x32xf32>
    %154 = vector.extract_strided_slice %151 {offsets = [0, 64], sizes = [2, 32], strides = [1, 1]} : vector<2x128xf32> to vector<2x32xf32>
    %155 = vector.extract_strided_slice %150 {offsets = [0, 96], sizes = [2, 32], strides = [1, 1]} : vector<2x128xf32> to vector<2x32xf32>
    %156 = arith.mulf %153, %118 : vector<2x32xf32>
    %157 = arith.mulf %152, %154 : vector<2x32xf32>
    %158 = arith.addf %156, %157 : vector<2x32xf32>
    %159 = math.tanh %158 : vector<2x32xf32>
    %160 = arith.mulf %155, %159 : vector<2x32xf32>
    %cst_37 = arith.constant dense<0.000000e+00> : vector<2x256xf32>
    %161 = tpu.matmul %160, %0, %cst_37 {dimension_numbers = #tpu.dot_dimension_numbers<[1], [0], [0], [1], [0, 0, 1, 1], [], []>} : vector<2x32xf32>, vector<32x256xf32>, vector<2x256xf32> -> vector<2x256xf32>
    %cst_38 = arith.constant dense<0.000000e+00> : vector<2x128xf32>
    %162 = tpu.matmul %140, %1, %cst_38 {dimension_numbers = #tpu.dot_dimension_numbers<[1], [0], [0], [1], [0, 0, 1, 1], [], []>} : vector<2x32xf32>, vector<32x128xf32>, vector<2x128xf32> -> vector<2x128xf32>
    %163 = vector.extract_strided_slice %161 {offsets = [0, 0], sizes = [2, 128], strides = [1, 1]} : vector<2x256xf32> to vector<2x128xf32>
    %164 = arith.addf %163, %162 : vector<2x128xf32>
    %165 = arith.addf %164, %4 : vector<2x128xf32>
    %166 = arith.negf %165 : vector<2x128xf32>
    %167 = math.exp %166 : vector<2x128xf32>
    %cst_39 = arith.constant 1.000000e+00 : f32
    %168 = vector.broadcast %cst_39 : f32 to vector<2x128xf32>
    %169 = arith.addf %168, %167 : vector<2x128xf32>
    %170 = arith.divf %168, %169 : vector<2x128xf32>
    %171 = math.tanh %165 : vector<2x128xf32>
    %172 = vector.extract_strided_slice %170 {offsets = [0, 0], sizes = [2, 32], strides = [1, 1]} : vector<2x128xf32> to vector<2x32xf32>
    %173 = vector.extract_strided_slice %170 {offsets = [0, 32], sizes = [2, 32], strides = [1, 1]} : vector<2x128xf32> to vector<2x32xf32>
    %174 = vector.extract_strided_slice %171 {offsets = [0, 64], sizes = [2, 32], strides = [1, 1]} : vector<2x128xf32> to vector<2x32xf32>
    %175 = vector.extract_strided_slice %170 {offsets = [0, 96], sizes = [2, 32], strides = [1, 1]} : vector<2x128xf32> to vector<2x32xf32>
    %176 = arith.mulf %173, %138 : vector<2x32xf32>
    %177 = arith.mulf %172, %174 : vector<2x32xf32>
    %178 = arith.addf %176, %177 : vector<2x32xf32>
    %179 = math.tanh %178 : vector<2x32xf32>
    %180 = arith.mulf %175, %179 : vector<2x32xf32>
    %181 = vector.extract_strided_slice %161 {offsets = [0, 128], sizes = [2, 128], strides = [1, 1]} : vector<2x256xf32> to vector<2x128xf32>
    %c4_i32 = arith.constant 4 : i32
    %182 = arith.index_cast %c4_i32 : i32 to index
    %c0_40 = arith.constant 0 : index
    %c0_41 = arith.constant 0 : index
    %183 = vector.load %arg5[%182, %c0_40, %c0_41] : memref<8x2x128xf32, #tpu.memory_space<vmem>>, vector<1x2x128xf32>
    %184 = vector.shape_cast %183 : vector<1x2x128xf32> to vector<2x128xf32>
    %185 = arith.addf %184, %181 : vector<2x128xf32>
    %186 = arith.negf %185 : vector<2x128xf32>
    %187 = math.exp %186 : vector<2x128xf32>
    %cst_42 = arith.constant 1.000000e+00 : f32
    %188 = vector.broadcast %cst_42 : f32 to vector<2x128xf32>
    %189 = arith.addf %188, %187 : vector<2x128xf32>
    %190 = arith.divf %188, %189 : vector<2x128xf32>
    %191 = math.tanh %185 : vector<2x128xf32>
    %192 = vector.extract_strided_slice %190 {offsets = [0, 0], sizes = [2, 32], strides = [1, 1]} : vector<2x128xf32> to vector<2x32xf32>
    %193 = vector.extract_strided_slice %190 {offsets = [0, 32], sizes = [2, 32], strides = [1, 1]} : vector<2x128xf32> to vector<2x32xf32>
    %194 = vector.extract_strided_slice %191 {offsets = [0, 64], sizes = [2, 32], strides = [1, 1]} : vector<2x128xf32> to vector<2x32xf32>
    %195 = vector.extract_strided_slice %190 {offsets = [0, 96], sizes = [2, 32], strides = [1, 1]} : vector<2x128xf32> to vector<2x32xf32>
    %196 = arith.mulf %193, %158 : vector<2x32xf32>
    %197 = arith.mulf %192, %194 : vector<2x32xf32>
    %198 = arith.addf %196, %197 : vector<2x32xf32>
    %199 = math.tanh %198 : vector<2x32xf32>
    %200 = arith.mulf %195, %199 : vector<2x32xf32>
    %cst_43 = arith.constant dense<0.000000e+00> : vector<2x256xf32>
    %201 = tpu.matmul %200, %0, %cst_43 {dimension_numbers = #tpu.dot_dimension_numbers<[1], [0], [0], [1], [0, 0, 1, 1], [], []>} : vector<2x32xf32>, vector<32x256xf32>, vector<2x256xf32> -> vector<2x256xf32>
    %cst_44 = arith.constant dense<0.000000e+00> : vector<2x128xf32>
    %202 = tpu.matmul %180, %1, %cst_44 {dimension_numbers = #tpu.dot_dimension_numbers<[1], [0], [0], [1], [0, 0, 1, 1], [], []>} : vector<2x32xf32>, vector<32x128xf32>, vector<2x128xf32> -> vector<2x128xf32>
    %203 = vector.extract_strided_slice %201 {offsets = [0, 0], sizes = [2, 128], strides = [1, 1]} : vector<2x256xf32> to vector<2x128xf32>
    %204 = arith.addf %203, %202 : vector<2x128xf32>
    %205 = arith.addf %204, %4 : vector<2x128xf32>
    %206 = arith.negf %205 : vector<2x128xf32>
    %207 = math.exp %206 : vector<2x128xf32>
    %cst_45 = arith.constant 1.000000e+00 : f32
    %208 = vector.broadcast %cst_45 : f32 to vector<2x128xf32>
    %209 = arith.addf %208, %207 : vector<2x128xf32>
    %210 = arith.divf %208, %209 : vector<2x128xf32>
    %211 = math.tanh %205 : vector<2x128xf32>
    %212 = vector.extract_strided_slice %210 {offsets = [0, 0], sizes = [2, 32], strides = [1, 1]} : vector<2x128xf32> to vector<2x32xf32>
    %213 = vector.extract_strided_slice %210 {offsets = [0, 32], sizes = [2, 32], strides = [1, 1]} : vector<2x128xf32> to vector<2x32xf32>
    %214 = vector.extract_strided_slice %211 {offsets = [0, 64], sizes = [2, 32], strides = [1, 1]} : vector<2x128xf32> to vector<2x32xf32>
    %215 = vector.extract_strided_slice %210 {offsets = [0, 96], sizes = [2, 32], strides = [1, 1]} : vector<2x128xf32> to vector<2x32xf32>
    %216 = arith.mulf %213, %178 : vector<2x32xf32>
    %217 = arith.mulf %212, %214 : vector<2x32xf32>
    %218 = arith.addf %216, %217 : vector<2x32xf32>
    %219 = math.tanh %218 : vector<2x32xf32>
    %220 = arith.mulf %215, %219 : vector<2x32xf32>
    %221 = vector.extract_strided_slice %201 {offsets = [0, 128], sizes = [2, 128], strides = [1, 1]} : vector<2x256xf32> to vector<2x128xf32>
    %c5_i32 = arith.constant 5 : i32
    %222 = arith.index_cast %c5_i32 : i32 to index
    %c0_46 = arith.constant 0 : index
    %c0_47 = arith.constant 0 : index
    %223 = vector.load %arg5[%222, %c0_46, %c0_47] : memref<8x2x128xf32, #tpu.memory_space<vmem>>, vector<1x2x128xf32>
    %224 = vector.shape_cast %223 : vector<1x2x128xf32> to vector<2x128xf32>
    %225 = arith.addf %224, %221 : vector<2x128xf32>
    %226 = arith.negf %225 : vector<2x128xf32>
    %227 = math.exp %226 : vector<2x128xf32>
    %cst_48 = arith.constant 1.000000e+00 : f32
    %228 = vector.broadcast %cst_48 : f32 to vector<2x128xf32>
    %229 = arith.addf %228, %227 : vector<2x128xf32>
    %230 = arith.divf %228, %229 : vector<2x128xf32>
    %231 = math.tanh %225 : vector<2x128xf32>
    %232 = vector.extract_strided_slice %230 {offsets = [0, 0], sizes = [2, 32], strides = [1, 1]} : vector<2x128xf32> to vector<2x32xf32>
    %233 = vector.extract_strided_slice %230 {offsets = [0, 32], sizes = [2, 32], strides = [1, 1]} : vector<2x128xf32> to vector<2x32xf32>
    %234 = vector.extract_strided_slice %231 {offsets = [0, 64], sizes = [2, 32], strides = [1, 1]} : vector<2x128xf32> to vector<2x32xf32>
    %235 = vector.extract_strided_slice %230 {offsets = [0, 96], sizes = [2, 32], strides = [1, 1]} : vector<2x128xf32> to vector<2x32xf32>
    %236 = arith.mulf %233, %198 : vector<2x32xf32>
    %237 = arith.mulf %232, %234 : vector<2x32xf32>
    %238 = arith.addf %236, %237 : vector<2x32xf32>
    %239 = math.tanh %238 : vector<2x32xf32>
    %240 = arith.mulf %235, %239 : vector<2x32xf32>
    %cst_49 = arith.constant dense<0.000000e+00> : vector<2x256xf32>
    %241 = tpu.matmul %240, %0, %cst_49 {dimension_numbers = #tpu.dot_dimension_numbers<[1], [0], [0], [1], [0, 0, 1, 1], [], []>} : vector<2x32xf32>, vector<32x256xf32>, vector<2x256xf32> -> vector<2x256xf32>
    %cst_50 = arith.constant dense<0.000000e+00> : vector<2x128xf32>
    %242 = tpu.matmul %220, %1, %cst_50 {dimension_numbers = #tpu.dot_dimension_numbers<[1], [0], [0], [1], [0, 0, 1, 1], [], []>} : vector<2x32xf32>, vector<32x128xf32>, vector<2x128xf32> -> vector<2x128xf32>
    %243 = vector.extract_strided_slice %241 {offsets = [0, 0], sizes = [2, 128], strides = [1, 1]} : vector<2x256xf32> to vector<2x128xf32>
    %244 = arith.addf %243, %242 : vector<2x128xf32>
    %245 = arith.addf %244, %4 : vector<2x128xf32>
    %246 = arith.negf %245 : vector<2x128xf32>
    %247 = math.exp %246 : vector<2x128xf32>
    %cst_51 = arith.constant 1.000000e+00 : f32
    %248 = vector.broadcast %cst_51 : f32 to vector<2x128xf32>
    %249 = arith.addf %248, %247 : vector<2x128xf32>
    %250 = arith.divf %248, %249 : vector<2x128xf32>
    %251 = math.tanh %245 : vector<2x128xf32>
    %252 = vector.extract_strided_slice %250 {offsets = [0, 0], sizes = [2, 32], strides = [1, 1]} : vector<2x128xf32> to vector<2x32xf32>
    %253 = vector.extract_strided_slice %250 {offsets = [0, 32], sizes = [2, 32], strides = [1, 1]} : vector<2x128xf32> to vector<2x32xf32>
    %254 = vector.extract_strided_slice %251 {offsets = [0, 64], sizes = [2, 32], strides = [1, 1]} : vector<2x128xf32> to vector<2x32xf32>
    %255 = vector.extract_strided_slice %250 {offsets = [0, 96], sizes = [2, 32], strides = [1, 1]} : vector<2x128xf32> to vector<2x32xf32>
    %256 = arith.mulf %253, %218 : vector<2x32xf32>
    %257 = arith.mulf %252, %254 : vector<2x32xf32>
    %258 = arith.addf %256, %257 : vector<2x32xf32>
    %259 = math.tanh %258 : vector<2x32xf32>
    %260 = arith.mulf %255, %259 : vector<2x32xf32>
    %261 = vector.extract_strided_slice %241 {offsets = [0, 128], sizes = [2, 128], strides = [1, 1]} : vector<2x256xf32> to vector<2x128xf32>
    %c6_i32 = arith.constant 6 : i32
    %262 = arith.index_cast %c6_i32 : i32 to index
    %c0_52 = arith.constant 0 : index
    %c0_53 = arith.constant 0 : index
    %263 = vector.load %arg5[%262, %c0_52, %c0_53] : memref<8x2x128xf32, #tpu.memory_space<vmem>>, vector<1x2x128xf32>
    %264 = vector.shape_cast %263 : vector<1x2x128xf32> to vector<2x128xf32>
    %265 = arith.addf %264, %261 : vector<2x128xf32>
    %266 = arith.negf %265 : vector<2x128xf32>
    %267 = math.exp %266 : vector<2x128xf32>
    %cst_54 = arith.constant 1.000000e+00 : f32
    %268 = vector.broadcast %cst_54 : f32 to vector<2x128xf32>
    %269 = arith.addf %268, %267 : vector<2x128xf32>
    %270 = arith.divf %268, %269 : vector<2x128xf32>
    %271 = math.tanh %265 : vector<2x128xf32>
    %272 = vector.extract_strided_slice %270 {offsets = [0, 0], sizes = [2, 32], strides = [1, 1]} : vector<2x128xf32> to vector<2x32xf32>
    %273 = vector.extract_strided_slice %270 {offsets = [0, 32], sizes = [2, 32], strides = [1, 1]} : vector<2x128xf32> to vector<2x32xf32>
    %274 = vector.extract_strided_slice %271 {offsets = [0, 64], sizes = [2, 32], strides = [1, 1]} : vector<2x128xf32> to vector<2x32xf32>
    %275 = vector.extract_strided_slice %270 {offsets = [0, 96], sizes = [2, 32], strides = [1, 1]} : vector<2x128xf32> to vector<2x32xf32>
    %276 = arith.mulf %273, %238 : vector<2x32xf32>
    %277 = arith.mulf %272, %274 : vector<2x32xf32>
    %278 = arith.addf %276, %277 : vector<2x32xf32>
    %279 = math.tanh %278 : vector<2x32xf32>
    %280 = arith.mulf %275, %279 : vector<2x32xf32>
    %cst_55 = arith.constant dense<0.000000e+00> : vector<2x256xf32>
    %281 = tpu.matmul %280, %0, %cst_55 {dimension_numbers = #tpu.dot_dimension_numbers<[1], [0], [0], [1], [0, 0, 1, 1], [], []>} : vector<2x32xf32>, vector<32x256xf32>, vector<2x256xf32> -> vector<2x256xf32>
    %cst_56 = arith.constant dense<0.000000e+00> : vector<2x128xf32>
    %282 = tpu.matmul %260, %1, %cst_56 {dimension_numbers = #tpu.dot_dimension_numbers<[1], [0], [0], [1], [0, 0, 1, 1], [], []>} : vector<2x32xf32>, vector<32x128xf32>, vector<2x128xf32> -> vector<2x128xf32>
    %283 = vector.extract_strided_slice %281 {offsets = [0, 0], sizes = [2, 128], strides = [1, 1]} : vector<2x256xf32> to vector<2x128xf32>
    %284 = arith.addf %283, %282 : vector<2x128xf32>
    %285 = arith.addf %284, %4 : vector<2x128xf32>
    %286 = arith.negf %285 : vector<2x128xf32>
    %287 = math.exp %286 : vector<2x128xf32>
    %cst_57 = arith.constant 1.000000e+00 : f32
    %288 = vector.broadcast %cst_57 : f32 to vector<2x128xf32>
    %289 = arith.addf %288, %287 : vector<2x128xf32>
    %290 = arith.divf %288, %289 : vector<2x128xf32>
    %291 = math.tanh %285 : vector<2x128xf32>
    %292 = vector.extract_strided_slice %290 {offsets = [0, 0], sizes = [2, 32], strides = [1, 1]} : vector<2x128xf32> to vector<2x32xf32>
    %293 = vector.extract_strided_slice %290 {offsets = [0, 32], sizes = [2, 32], strides = [1, 1]} : vector<2x128xf32> to vector<2x32xf32>
    %294 = vector.extract_strided_slice %291 {offsets = [0, 64], sizes = [2, 32], strides = [1, 1]} : vector<2x128xf32> to vector<2x32xf32>
    %295 = vector.extract_strided_slice %290 {offsets = [0, 96], sizes = [2, 32], strides = [1, 1]} : vector<2x128xf32> to vector<2x32xf32>
    %296 = arith.mulf %293, %258 : vector<2x32xf32>
    %297 = arith.mulf %292, %294 : vector<2x32xf32>
    %298 = arith.addf %296, %297 : vector<2x32xf32>
    %299 = math.tanh %298 : vector<2x32xf32>
    %300 = arith.mulf %295, %299 : vector<2x32xf32>
    %301 = vector.extract_strided_slice %281 {offsets = [0, 128], sizes = [2, 128], strides = [1, 1]} : vector<2x256xf32> to vector<2x128xf32>
    %c7_i32 = arith.constant 7 : i32
    %302 = arith.index_cast %c7_i32 : i32 to index
    %c0_58 = arith.constant 0 : index
    %c0_59 = arith.constant 0 : index
    %303 = vector.load %arg5[%302, %c0_58, %c0_59] : memref<8x2x128xf32, #tpu.memory_space<vmem>>, vector<1x2x128xf32>
    %304 = vector.shape_cast %303 : vector<1x2x128xf32> to vector<2x128xf32>
    %305 = arith.addf %304, %301 : vector<2x128xf32>
    %306 = arith.negf %305 : vector<2x128xf32>
    %307 = math.exp %306 : vector<2x128xf32>
    %cst_60 = arith.constant 1.000000e+00 : f32
    %308 = vector.broadcast %cst_60 : f32 to vector<2x128xf32>
    %309 = arith.addf %308, %307 : vector<2x128xf32>
    %310 = arith.divf %308, %309 : vector<2x128xf32>
    %311 = math.tanh %305 : vector<2x128xf32>
    %312 = vector.extract_strided_slice %310 {offsets = [0, 0], sizes = [2, 32], strides = [1, 1]} : vector<2x128xf32> to vector<2x32xf32>
    %313 = vector.extract_strided_slice %310 {offsets = [0, 32], sizes = [2, 32], strides = [1, 1]} : vector<2x128xf32> to vector<2x32xf32>
    %314 = vector.extract_strided_slice %311 {offsets = [0, 64], sizes = [2, 32], strides = [1, 1]} : vector<2x128xf32> to vector<2x32xf32>
    %315 = vector.extract_strided_slice %310 {offsets = [0, 96], sizes = [2, 32], strides = [1, 1]} : vector<2x128xf32> to vector<2x32xf32>
    %316 = arith.mulf %313, %278 : vector<2x32xf32>
    %317 = arith.mulf %312, %314 : vector<2x32xf32>
    %318 = arith.addf %316, %317 : vector<2x32xf32>
    %319 = math.tanh %318 : vector<2x32xf32>
    %320 = arith.mulf %315, %319 : vector<2x32xf32>
    %cst_61 = arith.constant dense<0.000000e+00> : vector<2x256xf32>
    %321 = tpu.matmul %320, %0, %cst_61 {dimension_numbers = #tpu.dot_dimension_numbers<[1], [0], [0], [1], [0, 0, 1, 1], [], []>} : vector<2x32xf32>, vector<32x256xf32>, vector<2x256xf32> -> vector<2x256xf32>
    %cst_62 = arith.constant dense<0.000000e+00> : vector<2x128xf32>
    %322 = tpu.matmul %300, %1, %cst_62 {dimension_numbers = #tpu.dot_dimension_numbers<[1], [0], [0], [1], [0, 0, 1, 1], [], []>} : vector<2x32xf32>, vector<32x128xf32>, vector<2x128xf32> -> vector<2x128xf32>
    %323 = vector.extract_strided_slice %321 {offsets = [0, 0], sizes = [2, 128], strides = [1, 1]} : vector<2x256xf32> to vector<2x128xf32>
    %324 = arith.addf %323, %322 : vector<2x128xf32>
    %325 = arith.addf %324, %4 : vector<2x128xf32>
    %326 = arith.negf %325 : vector<2x128xf32>
    %327 = math.exp %326 : vector<2x128xf32>
    %cst_63 = arith.constant 1.000000e+00 : f32
    %328 = vector.broadcast %cst_63 : f32 to vector<2x128xf32>
    %329 = arith.addf %328, %327 : vector<2x128xf32>
    %330 = arith.divf %328, %329 : vector<2x128xf32>
    %331 = math.tanh %325 : vector<2x128xf32>
    %332 = vector.extract_strided_slice %330 {offsets = [0, 0], sizes = [2, 32], strides = [1, 1]} : vector<2x128xf32> to vector<2x32xf32>
    %333 = vector.extract_strided_slice %330 {offsets = [0, 32], sizes = [2, 32], strides = [1, 1]} : vector<2x128xf32> to vector<2x32xf32>
    %334 = vector.extract_strided_slice %331 {offsets = [0, 64], sizes = [2, 32], strides = [1, 1]} : vector<2x128xf32> to vector<2x32xf32>
    %335 = vector.extract_strided_slice %330 {offsets = [0, 96], sizes = [2, 32], strides = [1, 1]} : vector<2x128xf32> to vector<2x32xf32>
    %336 = arith.mulf %333, %298 : vector<2x32xf32>
    %337 = arith.mulf %332, %334 : vector<2x32xf32>
    %338 = arith.addf %336, %337 : vector<2x32xf32>
    %339 = math.tanh %338 : vector<2x32xf32>
    %340 = arith.mulf %335, %339 : vector<2x32xf32>
    %341 = vector.extract_strided_slice %321 {offsets = [0, 128], sizes = [2, 128], strides = [1, 1]} : vector<2x256xf32> to vector<2x128xf32>
    %c8_i32 = arith.constant 8 : i32
    %c3 = arith.constant 3 : index
    %c0_64 = arith.constant 0 : index
    %342 = vector.load %arg2[%c3, %c0_64] : memref<16x128xf32, #tpu.memory_space<vmem>>, vector<1x32xf32>
    %c4 = arith.constant 4 : index
    %c0_65 = arith.constant 0 : index
    %343 = vector.load %arg2[%c4, %c0_65] : memref<16x128xf32, #tpu.memory_space<vmem>>, vector<1x1xf32>
    %344 = vector.broadcast %342 : vector<1x32xf32> to vector<2x32xf32>
    %345 = arith.mulf %340, %344 : vector<2x32xf32>
    %cst_66 = arith.constant dense<0.000000e+00> : vector<2xf32>
    %346 = vector.multi_reduction <add>, %345, %cst_66 [1] : vector<2x32xf32> to vector<2xf32>
    %347 = vector.shape_cast %346 : vector<2xf32> to vector<2x1xf32>
    %348 = vector.broadcast %343 : vector<1x1xf32> to vector<2x1xf32>
    %349 = arith.addf %347, %348 : vector<2x1xf32>
    %c0_67 = arith.constant 0 : index
    %c0_68 = arith.constant 0 : index
    %350 = vector.load %arg4[%c0_67, %c0_68] : memref<2x1xf32, #tpu.memory_space<vmem>>, vector<2x1xf32>
    tpu.vector_store %arg4[%c0_67, %c0_68], %349 {strides = array<i32>} : memref<2x1xf32, #tpu.memory_space<vmem>>, vector<2x1xf32>,
    return
  }
  func.func @transform_0(%arg0: i32) -> (i32, i32, i32) {
    %c0_i32 = arith.constant 0 : i32
    %c0_i32_0 = arith.constant 0 : i32
    %c0_i32_1 = arith.constant 0 : i32
    %c0_i32_2 = arith.constant 0 : i32
    return %c0_i32, %c0_i32_0, %c0_i32_1 : i32, i32, i32
  }
  func.func @transform_1(%arg0: i32) -> (i32, i32) {
    %c0_i32 = arith.constant 0 : i32
    %c0_i32_0 = arith.constant 0 : i32
    %c0_i32_1 = arith.constant 0 : i32
    return %c0_i32, %c0_i32_0 : i32, i32
  }
  func.func @transform_2(%arg0: i32) -> (i32, i32) {
    %c0_i32 = arith.constant 0 : i32
    %c0_i32_0 = arith.constant 0 : i32
    %c0_i32_1 = arith.constant 0 : i32
    return %c0_i32, %c0_i32_0 : i32, i32
  }
  func.func @transform_3(%arg0: i32) -> (i32, i32) {
    %c0_i32 = arith.constant 0 : i32
    %c0_i32_0 = arith.constant 0 : i32
    %c0_i32_1 = arith.constant 0 : i32
    return %c0_i32, %c0_i32_0 : i32, i32
  }
}

</mosaic_0001>

<llo_original>
// kernel: tpu_custom_call.1
$region0: #{tpu_custom_call.1}
  #allocation0 [shape = 'u32[]', space=smem, size = 0x4, offset = 0x4, fixed_abs, tag = 'smem constant byte address 0x4 - core index']
  #allocation1 [shape = 'u32[144,128]{1,0:T(1,128)}', space=vmem, size = 0x12000, scoped, tag = 'internal scratch']
  #allocation2 [shape = 'f32[8,2,128]{2,1,0:T(2,128)}', space=vmem, size = 0x2000, scoped, tag = 'scratch operand']
  %s0 = inlined_call_operand.vmem [shape: f32[8,2,1], index: 0, kind: input, shape index: {}]
  %s1 = inlined_call_operand.vmem [shape: f32[16,128], index: 1, kind: input, shape index: {}]
  %s2 = inlined_call_operand.hbm [shape: f32[64,256], index: 2, kind: input, shape index: {}]
  %s3 = inlined_call_operand.vmem [shape: f32[2,1], index: 3, kind: output, shape index: {}]
  %s4 = sld [smem:[#allocation0]]
  $region26: #{tpu_custom_call.1} parent=0
    _
  %s6 = ssub.s32 1, %s4
  %s7 = scalar_select 0, %s6, %s4
  $region1: #{tpu_custom_call.1} parent=0
    #allocation3 [shape = 'u8[65536]{0}', space=vmem, size = 0x10000, scoped, tag = 'input window, operand 2, single buffered']
    #allocation4 [shape = 's32[1]{0}', space=sflag, size = 0x4, scoped, tag = 'scoped memory for tpu_custom_call.1']
    %8 = vsyncpa [#allocation4], 0
    // Predicated region
    $region2: #{tpu_custom_call.1} parent=1 // pred_check
      _
    $region3: #{tpu_custom_call.1} parent=1 // pred_check_branch
      %10 = sbr.rel (0) target = $region5
    $region4: #{tpu_custom_call.1} parent=1 // pred_region
      _
    $region5: #{tpu_custom_call.1} parent=1 // pred_fallthru
      _
    // Predicated region
    $region6: #{tpu_custom_call.1} parent=1 // pred_check
      _
    $region7: #{tpu_custom_call.1} parent=1 // pred_check_branch
      %12 = sbr.rel (0) target = $region9
    $region8: #{tpu_custom_call.1} parent=1 // pred_region
      _
    $region9: #{tpu_custom_call.1} parent=1 // pred_fallthru
      _
    // Predicated region
    $region10: #{tpu_custom_call.1} parent=1 // pred_check
      _
    $region11: #{tpu_custom_call.1} parent=1 // pred_check_branch
      %14 = sbr.rel (0) target = $region13
    $region12: #{tpu_custom_call.1} parent=1 // pred_region
      %s16 = ssub.s32 2048, 2048
      %17 = vsyncadd [#allocation4], %s16
      %s18 = sshll.u32 [#allocation3], 4
      %s19 = int_to_ptr.vmem [resolvable:$true] %s18
      %24 = dma.hbm_to_vmem [thread:$0]  %s2, 2048, %s19, [#allocation4], 256, 256, 16
    $region13: #{tpu_custom_call.1} parent=1 // pred_fallthru
      _
    // Predicated region
    $region14: #{tpu_custom_call.1} parent=1 // pred_check
      _
    $region15: #{tpu_custom_call.1} parent=1 // pred_check_branch
      %26 = sbr.rel (0) target = $region17
    $region16: #{tpu_custom_call.1} parent=1 // pred_region
      %27 = dma.done [#allocation4], 2048
    $region17: #{tpu_custom_call.1} parent=1 // pred_fallthru
      _
    %v28 = vld [vmem:[#allocation3] sm:$0xff]
    %v29 = vld [vmem:[#allocation3 + $0x8] sm:$0xff]
    %v30 = vld [vmem:[#allocation3 + $0x10] sm:$0xff]
    %v31 = vld [vmem:[#allocation3 + $0x18] sm:$0xff]
    %v32 = vld [vmem:[#allocation3 + $0x20] sm:$0xff]
    %v33 = vld [vmem:[#allocation3 + $0x28] sm:$0xff]
    %v34 = vld [vmem:[#allocation3 + $0x30] sm:$0xff]
    %v35 = vld [vmem:[#allocation3 + $0x38] sm:$0xff]
    %v36 = vld [vmem:[#allocation3 + $0x40] sm:$0xff]
    %v37 = vld [vmem:[#allocation3 + $0x50] sm:$0xff]
    %v38 = vld [vmem:[#allocation3 + $0x60] sm:$0xff]
    %v39 = vld [vmem:[#allocation3 + $0x70] sm:$0xff]
    %v40 = vld [vmem:[%s1 + $0x2] sm:$0x1]
    %v41 = vlaneseq
    %v42 = vshrl.u32 %v41, 7
    %v43 = vsub.s32 0, %v42
    %v44 = vrot.slane %v40, %v43
    %v45 = vld [vmem:[%s1 + $0x8] sm:$0x3]
    %v46 = vld [vmem:[%s1 + $0xa] sm:$0x3]
    %v47 = vld [vmem:[%s1 + $0xc] sm:$0x3]
    %v48 = vld [vmem:[%s1 + $0xe] sm:$0x3]
    %v49 = vld [vmem:[%s0] sm:$0x3]
    %v50 = vld [vmem:[%s0 + $0x2] sm:$0x3]
    %v51 = vld [vmem:[%s0 + $0x4] sm:$0x3]
    %v52 = vld [vmem:[%s0 + $0x6] sm:$0x3]
    %v53 = vld [vmem:[%s0 + $0x8] sm:$0x3]
    %v54 = vld [vmem:[%s0 + $0xa] sm:$0x3]
    %v55 = vld [vmem:[%s0 + $0xc] sm:$0x3]
    %v56 = vld [vmem:[%s0 + $0xe] sm:$0x3]
    %v57 = vld [vmem:[%s1] sm:$0x1]
    %59 = vset.pattern.permute.xlu0 0
    %60 = vperm.xlu0 %59, %v49
    %v61 = vpop.permute.xlu0 %60
    %64 = vset.pattern.permute.xlu0 0
    %65 = vperm.xlu0 %64, %v50
    %v66 = vpop.permute.xlu0 %65
    %69 = vset.pattern.permute.xlu0 0
    %70 = vperm.xlu0 %69, %v51
    %v71 = vpop.permute.xlu0 %70
    %74 = vset.pattern.permute.xlu0 0
    %75 = vperm.xlu0 %74, %v52
    %v76 = vpop.permute.xlu0 %75
    %79 = vset.pattern.permute.xlu0 0
    %80 = vperm.xlu0 %79, %v53
    %v81 = vpop.permute.xlu0 %80
    %84 = vset.pattern.permute.xlu0 0
    %85 = vperm.xlu0 %84, %v54
    %v86 = vpop.permute.xlu0 %85
    %89 = vset.pattern.permute.xlu0 0
    %90 = vperm.xlu0 %89, %v55
    %v91 = vpop.permute.xlu0 %90
    %94 = vset.pattern.permute.xlu0 0
    %95 = vperm.xlu0 %94, %v56
    %v96 = vpop.permute.xlu0 %95
    %v98 = vlaneseq
    %v99 = vshrl.u32 %v98, 7
    %v100 = vsub.s32 0, %v99
    %v101 = vrot.slane %v57, %v100
    %v102 = vmul.f32 %v61, %v101
    %v103 = vmul.f32 %v66, %v101
    %v104 = vmul.f32 %v71, %v101
    %v105 = vmul.f32 %v76, %v101
    %v106 = vmul.f32 %v81, %v101
    %v107 = vmul.f32 %v86, %v101
    %v108 = vmul.f32 %v91, %v101
    %v109 = vmul.f32 %v96, %v101
    %v110 = vld [vmem:[%s1 + $0x1] sm:$0x1]
    %v111 = vlaneseq
    %v112 = vshrl.u32 %v111, 7
    %v113 = vsub.s32 0, %v112
    %v114 = vrot.slane %v110, %v113
    %v115 = vadd.f32 %v102, %v114
    %v116 = vadd.f32 %v103, %v114
    %v117 = vadd.f32 %v104, %v114
    %v118 = vadd.f32 %v105, %v114
    %v119 = vadd.f32 %v106, %v114
    %v120 = vadd.f32 %v107, %v114
    %v121 = vadd.f32 %v108, %v114
    %v122 = vadd.f32 %v109, %v114
    %123 = vst [vmem:[#allocation2] sm:$0x3] %v115
    %124 = vst [vmem:[#allocation2 + $0x2] sm:$0x3] %v116
    %125 = vst [vmem:[#allocation2 + $0x4] sm:$0x3] %v117
    %126 = vst [vmem:[#allocation2 + $0x6] sm:$0x3] %v118
    %127 = vst [vmem:[#allocation2 + $0x8] sm:$0x3] %v119
    %128 = vst [vmem:[#allocation2 + $0xa] sm:$0x3] %v120
    %129 = vst [vmem:[#allocation2 + $0xc] sm:$0x3] %v121
    %130 = vst [vmem:[#allocation2 + $0xe] sm:$0x3] %v122
    %vm131 = vcmask 261120
    %v133 = vsel %vm131, %v45, 0
    %135 = vmatprep.subr.mxu0 %v29
    %136 = vmatpush1.msra.mxu0 %v28
    %137 = vmatprep.subr.mxu0 %v31
    %138 = vmatpush1.msra.mxu0 %v30
    %139 = vmatprep.subr.mxu0 %v33
    %140 = vmatpush1.msra.mxu0 %v32
    %141 = vmatprep.subr.mxu0 %v35
    %142 = vmatpush1.msra.mxu0 %v34
    %143 = vmatprep.subr.mxu0 0.0
    %144 = vmatpush1.msra.mxu0 0.0
    %145 = vmatprep.subr.mxu0 0.0
    %146 = vmatpush1.msra.mxu0 0.0
    %147 = vmatprep.subr.mxu0 0.0
    %148 = vmatpush1.msra.mxu0 0.0
    %149 = vmatprep.subr.mxu0 0.0
    %150 = vmatpush1.msra.mxu0 0.0
    %151 = vmatprep.subr.mxu0 0.0
    %152 = vmatpush1.msra.mxu0 0.0
    %153 = vmatprep.subr.mxu0 0.0
    %154 = vmatpush1.msra.mxu0 0.0
    %155 = vmatprep.subr.mxu0 0.0
    %156 = vmatpush1.msra.mxu0 0.0
    %157 = vmatprep.subr.mxu0 0.0
    %158 = vmatpush1.msra.mxu0 0.0
    %159 = vmatprep.subr.mxu0 0.0
    %160 = vmatpush1.msra.mxu0 0.0
    %161 = vmatprep.subr.mxu0 0.0
    %162 = vmatpush1.msra.mxu0 0.0
    %163 = vmatprep.subr.mxu0 0.0
    %164 = vmatpush1.msra.mxu0 0.0
    %165 = vmatprep.subr.mxu0 0.0
    %166 = vmatpush1.msra.mxu0 0.0
    %167 = vmatprep.subr.mxu0 0.0
    %168 = vmatpush1.msra.mxu0 0.0
    %169 = vmatprep.subr.mxu0 0.0
    %170 = vmatpush1.msra.mxu0 0.0
    %171 = vmatprep.subr.mxu0 0.0
    %172 = vmatpush1.msra.mxu0 0.0
    %173 = vmatprep.subr.mxu0 0.0
    %174 = vmatpush1.msra.mxu0 0.0
    %175 = vmatprep.subr.mxu0 0.0
    %176 = vmatpush1.msra.mxu0 0.0
    %177 = vmatprep.subr.mxu0 0.0
    %178 = vmatpush1.msra.mxu0 0.0
    %179 = vmatprep.subr.mxu0 0.0
    %180 = vmatpush1.msra.mxu0 0.0
    %181 = vmatprep.subr.mxu0 0.0
    %182 = vmatpush1.msra.mxu0 0.0
    %183 = vmatprep.subr.mxu0 0.0
    %184 = vmatpush1.msra.mxu0 0.0
    %185 = vmatprep.subr.mxu0 0.0
    %186 = vmatpush1.msra.mxu0 0.0
    %187 = vmatprep.subr.mxu0 0.0
    %188 = vmatpush1.msra.mxu0 0.0
    %189 = vmatprep.subr.mxu0 0.0
    %190 = vmatpush1.msra.mxu0 0.0
    %191 = vmatprep.subr.mxu0 0.0
    %192 = vmatpush1.msra.mxu0 0.0
    %193 = vmatprep.subr.mxu0 0.0
    %194 = vmatpush1.msra.mxu0 0.0
    %195 = vmatprep.subr.mxu0 0.0
    %196 = vmatpush1.msra.mxu0 0.0
    %197 = vmatprep.subr.mxu0 0.0
    %198 = vmatpush1.msra.mxu0 0.0
    %199 = vmatprep.mubr.f32.mxu0 0.0
    %200 = vmatmul.mubr.f32.gmra.mrb[0].mxu0 %v133
    %v201 = vpop.f32.mrb[0].mxu0
    %v202 = vpop.f32.mrb[0].mxu0
    %v203 = vadd.f32 0.0, %v202
    %204 = vdwg.mxu0
    %v205 = vld [vmem:[#allocation2] sm:$0x3]
    %v206 = vadd.f32 %v205, %v203
    %v207 = vxor.u32 %v206, 2147483648
    %v208 = vmul.f32 %v207, 1.442695
    %v209 = vpow.pop %v208
    %v210 = vadd.f32 %v209, 1.0
    %v211 = vrcp.pop %v210
    %v212 = vmul.f32 1.0, %v211
    %v213 = vtanh.pop %v206
    %215 = vrot.lane.b32.xlu0 %v46, 32
    %v216 = vpop.permute.xlu0 %215
    %v218 = vmul.f32 %v212, %v216
    %220 = vrot.lane.b32.xlu0 %v213, 64
    %v221 = vpop.permute.xlu0 %220
    %v223 = vmul.f32 %v212, %v221
    %225 = vrot.lane.b32.xlu0 %v223, 32
    %v226 = vpop.permute.xlu0 %225
    %v228 = vadd.f32 %v218, %v226
    %v229 = vtanh.pop %v228
    %231 = vrot.lane.b32.xlu0 %v229, 64
    %v232 = vpop.permute.xlu0 %231
    %v234 = vmul.f32 %v212, %v232
    %236 = vrot.lane.b32.xlu0 %v234, 32
    %v237 = vpop.permute.xlu0 %236
    %v238 = vsel %vm131, %v237, 0
    %240 = vmatprep.subr.mxu0 %v29
    %241 = vmatpush1.msra.mxu0 %v28
    %242 = vmatprep.subr.mxu0 %v31
    %243 = vmatpush1.msra.mxu0 %v30
    %244 = vmatprep.subr.mxu0 %v33
    %245 = vmatpush1.msra.mxu0 %v32
    %246 = vmatprep.subr.mxu0 %v35
    %247 = vmatpush1.msra.mxu0 %v34
    %248 = vmatprep.subr.mxu0 0.0
    %249 = vmatpush1.msra.mxu0 0.0
    %250 = vmatprep.subr.mxu0 0.0
    %251 = vmatpush1.msra.mxu0 0.0
    %252 = vmatprep.subr.mxu0 0.0
    %253 = vmatpush1.msra.mxu0 0.0
    %254 = vmatprep.subr.mxu0 0.0
    %255 = vmatpush1.msra.mxu0 0.0
    %256 = vmatprep.subr.mxu0 0.0
    %257 = vmatpush1.msra.mxu0 0.0
    %258 = vmatprep.subr.mxu0 0.0
    %259 = vmatpush1.msra.mxu0 0.0
    %260 = vmatprep.subr.mxu0 0.0
    %261 = vmatpush1.msra.mxu0 0.0
    %262 = vmatprep.subr.mxu0 0.0
    %263 = vmatpush1.msra.mxu0 0.0
    %264 = vmatprep.subr.mxu0 0.0
    %265 = vmatpush1.msra.mxu0 0.0
    %266 = vmatprep.subr.mxu0 0.0
    %267 = vmatpush1.msra.mxu0 0.0
    %268 = vmatprep.subr.mxu0 0.0
    %269 = vmatpush1.msra.mxu0 0.0
    %270 = vmatprep.subr.mxu0 0.0
    %271 = vmatpush1.msra.mxu0 0.0
    %272 = vmatprep.subr.mxu0 0.0
    %273 = vmatpush1.msra.mxu0 0.0
    %274 = vmatprep.subr.mxu0 0.0
    %275 = vmatpush1.msra.mxu0 0.0
    %276 = vmatprep.subr.mxu0 0.0
    %277 = vmatpush1.msra.mxu0 0.0
    %278 = vmatprep.subr.mxu0 0.0
    %279 = vmatpush1.msra.mxu0 0.0
    %280 = vmatprep.subr.mxu0 0.0
    %281 = vmatpush1.msra.mxu0 0.0
    %282 = vmatprep.subr.mxu0 0.0
    %283 = vmatpush1.msra.mxu0 0.0
    %284 = vmatprep.subr.mxu0 0.0
    %285 = vmatpush1.msra.mxu0 0.0
    %286 = vmatprep.subr.mxu0 0.0
    %287 = vmatpush1.msra.mxu0 0.0
    %288 = vmatprep.subr.mxu0 0.0
    %289 = vmatpush1.msra.mxu0 0.0
    %290 = vmatprep.subr.mxu0 0.0
    %291 = vmatpush1.msra.mxu0 0.0
    %292 = vmatprep.subr.mxu0 0.0
    %293 = vmatpush1.msra.mxu0 0.0
    %294 = vmatprep.subr.mxu0 0.0
    %295 = vmatpush1.msra.mxu0 0.0
    %296 = vmatprep.subr.mxu0 0.0
    %297 = vmatpush1.msra.mxu0 0.0
    %298 = vmatprep.subr.mxu0 0.0
    %299 = vmatpush1.msra.mxu0 0.0
    %300 = vmatprep.subr.mxu0 0.0
    %301 = vmatpush1.msra.mxu0 0.0
    %302 = vmatprep.subr.mxu0 0.0
    %303 = vmatpush1.msra.mxu0 0.0
    %304 = vmatprep.mubr.f32.mxu0 0.0
    %305 = vmatmul.mubr.f32.gmra.mrb[0].mxu0 %v238
    %v306 = vpop.f32.mrb[0].mxu0
    %v307 = vadd.f32 0.0, %v306
    %v308 = vpop.f32.mrb[0].mxu0
    %v309 = vadd.f32 0.0, %v308
    %310 = vdwg.mxu0
    %v312 = vsel %vm131, %v47, 0
    %314 = vmatprep.subr.mxu0 0.0
    %315 = vmatpush1.msra.mxu0 %v36
    %316 = vmatprep.subr.mxu0 0.0
    %317 = vmatpush1.msra.mxu0 %v37
    %318 = vmatprep.subr.mxu0 0.0
    %319 = vmatpush1.msra.mxu0 %v38
    %320 = vmatprep.subr.mxu0 0.0
    %321 = vmatpush1.msra.mxu0 %v39
    %322 = vmatprep.subr.mxu0 0.0
    %323 = vmatpush1.msra.mxu0 0.0
    %324 = vmatprep.subr.mxu0 0.0
    %325 = vmatpush1.msra.mxu0 0.0
    %326 = vmatprep.subr.mxu0 0.0
    %327 = vmatpush1.msra.mxu0 0.0
    %328 = vmatprep.subr.mxu0 0.0
    %329 = vmatpush1.msra.mxu0 0.0
    %330 = vmatprep.subr.mxu0 0.0
    %331 = vmatpush1.msra.mxu0 0.0
    %332 = vmatprep.subr.mxu0 0.0
    %333 = vmatpush1.msra.mxu0 0.0
    %334 = vmatprep.subr.mxu0 0.0
    %335 = vmatpush1.msra.mxu0 0.0
    %336 = vmatprep.subr.mxu0 0.0
    %337 = vmatpush1.msra.mxu0 0.0
    %338 = vmatprep.subr.mxu0 0.0
    %339 = vmatpush1.msra.mxu0 0.0
    %340 = vmatprep.subr.mxu0 0.0
    %341 = vmatpush1.msra.mxu0 0.0
    %342 = vmatprep.subr.mxu0 0.0
    %343 = vmatpush1.msra.mxu0 0.0
    %344 = vmatprep.subr.mxu0 0.0
    %345 = vmatpush1.msra.mxu0 0.0
    %346 = vmatprep.subr.mxu0 0.0
    %347 = vmatpush1.msra.mxu0 0.0
    %348 = vmatprep.subr.mxu0 0.0
    %349 = vmatpush1.msra.mxu0 0.0
    %350 = vmatprep.subr.mxu0 0.0
    %351 = vmatpush1.msra.mxu0 0.0
    %352 = vmatprep.subr.mxu0 0.0
    %353 = vmatpush1.msra.mxu0 0.0
    %354 = vmatprep.subr.mxu0 0.0
    %355 = vmatpush1.msra.mxu0 0.0
    %356 = vmatprep.subr.mxu0 0.0
    %357 = vmatpush1.msra.mxu0 0.0
    %358 = vmatprep.subr.mxu0 0.0
    %359 = vmatpush1.msra.mxu0 0.0
    %360 = vmatprep.subr.mxu0 0.0
    %361 = vmatpush1.msra.mxu0 0.0
    %362 = vmatprep.subr.mxu0 0.0
    %363 = vmatpush1.msra.mxu0 0.0
    %364 = vmatprep.subr.mxu0 0.0
    %365 = vmatpush1.msra.mxu0 0.0
    %366 = vmatprep.subr.mxu0 0.0
    %367 = vmatpush1.msra.mxu0 0.0
    %368 = vmatprep.subr.mxu0 0.0
    %369 = vmatpush1.msra.mxu0 0.0
    %370 = vmatprep.subr.mxu0 0.0
    %371 = vmatpush1.msra.mxu0 0.0
    %372 = vmatprep.subr.mxu0 0.0
    %373 = vmatpush1.msra.mxu0 0.0
    %374 = vmatprep.subr.mxu0 0.0
    %375 = vmatpush1.msra.mxu0 0.0
    %376 = vmatprep.subr.mxu0 0.0
    %377 = vmatpush1.msra.mxu0 0.0
    %378 = vmatprep.mubr.f32.mxu0 0.0
    %379 = vmatmul.mubr.f32.gmra.mrb[0].mxu0 %v312
    %v380 = vpop.f32.mrb[0].mxu0
    %v381 = vadd.f32 0.0, %v380
    %v382 = vpop.f32.mrb[0].mxu0
    %383 = vdwg.mxu0
    %v384 = vadd.f32 %v307, %v381
    %v385 = vadd.f32 %v384, %v44
    %v386 = vxor.u32 %v385, 2147483648
    %v387 = vmul.f32 %v386, 1.442695
    %v388 = vpow.pop %v387
    %v389 = vadd.f32 %v388, 1.0
    %v390 = vrcp.pop %v389
    %v391 = vmul.f32 1.0, %v390
    %v392 = vtanh.pop %v385
    %394 = vrot.lane.b32.xlu0 %v48, 32
    %v395 = vpop.permute.xlu0 %394
    %v397 = vmul.f32 %v391, %v395
    %399 = vrot.lane.b32.xlu0 %v392, 64
    %v400 = vpop.permute.xlu0 %399
    %v402 = vmul.f32 %v391, %v400
    %404 = vrot.lane.b32.xlu0 %v402, 32
    %v405 = vpop.permute.xlu0 %404
    %v407 = vadd.f32 %v397, %v405
    %v408 = vtanh.pop %v407
    %410 = vrot.lane.b32.xlu0 %v408, 64
    %v411 = vpop.permute.xlu0 %410
    %v413 = vmul.f32 %v391, %v411
    %s414 = scalar_lea.vmem [#allocation2], 2
    %v415 = vld [vmem:[%s414] sm:$0x3]
    %v416 = vadd.f32 %v415, %v309
    %v417 = vxor.u32 %v416, 2147483648
    %v418 = vmul.f32 %v417, 1.442695
    %v419 = vpow.pop %v418
    %v420 = vadd.f32 %v419, 1.0
    %v421 = vrcp.pop %v420
    %v422 = vmul.f32 1.0, %v421
    %v423 = vtanh.pop %v416
    %v424 = vmul.f32 %v422, %v228
    %426 = vrot.lane.b32.xlu0 %v423, 64
    %v427 = vpop.permute.xlu0 %426
    %v429 = vmul.f32 %v422, %v427
    %431 = vrot.lane.b32.xlu0 %v429, 32
    %v432 = vpop.permute.xlu0 %431
    %v434 = vadd.f32 %v424, %v432
    %v435 = vtanh.pop %v434
    %437 = vrot.lane.b32.xlu0 %v435, 64
    %v438 = vpop.permute.xlu0 %437
    %v440 = vmul.f32 %v422, %v438
    %442 = vrot.lane.b32.xlu0 %v440, 32
    %v443 = vpop.permute.xlu0 %442
    %v444 = vsel %vm131, %v443, 0
    %446 = vmatprep.subr.mxu0 %v29
    %447 = vmatpush1.msra.mxu0 %v28
    %448 = vmatprep.subr.mxu0 %v31
    %449 = vmatpush1.msra.mxu0 %v30
    %450 = vmatprep.subr.mxu0 %v33
    %451 = vmatpush1.msra.mxu0 %v32
    %452 = vmatprep.subr.mxu0 %v35
    %453 = vmatpush1.msra.mxu0 %v34
    %454 = vmatprep.subr.mxu0 0.0
    %455 = vmatpush1.msra.mxu0 0.0
    %456 = vmatprep.subr.mxu0 0.0
    %457 = vmatpush1.msra.mxu0 0.0
    %458 = vmatprep.subr.mxu0 0.0
    %459 = vmatpush1.msra.mxu0 0.0
    %460 = vmatprep.subr.mxu0 0.0
    %461 = vmatpush1.msra.mxu0 0.0
    %462 = vmatprep.subr.mxu0 0.0
    %463 = vmatpush1.msra.mxu0 0.0
    %464 = vmatprep.subr.mxu0 0.0
    %465 = vmatpush1.msra.mxu0 0.0
    %466 = vmatprep.subr.mxu0 0.0
    %467 = vmatpush1.msra.mxu0 0.0
    %468 = vmatprep.subr.mxu0 0.0
    %469 = vmatpush1.msra.mxu0 0.0
    %470 = vmatprep.subr.mxu0 0.0
    %471 = vmatpush1.msra.mxu0 0.0
    %472 = vmatprep.subr.mxu0 0.0
    %473 = vmatpush1.msra.mxu0 0.0
    %474 = vmatprep.subr.mxu0 0.0
    %475 = vmatpush1.msra.mxu0 0.0
    %476 = vmatprep.subr.mxu0 0.0
    %477 = vmatpush1.msra.mxu0 0.0
    %478 = vmatprep.subr.mxu0 0.0
    %479 = vmatpush1.msra.mxu0 0.0
    %480 = vmatprep.subr.mxu0 0.0
    %481 = vmatpush1.msra.mxu0 0.0
    %482 = vmatprep.subr.mxu0 0.0
    %483 = vmatpush1.msra.mxu0 0.0
    %484 = vmatprep.subr.mxu0 0.0
    %485 = vmatpush1.msra.mxu0 0.0
    %486 = vmatprep.subr.mxu0 0.0
    %487 = vmatpush1.msra.mxu0 0.0
    %488 = vmatprep.subr.mxu0 0.0
    %489 = vmatpush1.msra.mxu0 0.0
    %490 = vmatprep.subr.mxu0 0.0
    %491 = vmatpush1.msra.mxu0 0.0
    %492 = vmatprep.subr.mxu0 0.0
    %493 = vmatpush1.msra.mxu0 0.0
    %494 = vmatprep.subr.mxu0 0.0
    %495 = vmatpush1.msra.mxu0 0.0
    %496 = vmatprep.subr.mxu0 0.0
    %497 = vmatpush1.msra.mxu0 0.0
    %498 = vmatprep.subr.mxu0 0.0
    %499 = vmatpush1.msra.mxu0 0.0
    %500 = vmatprep.subr.mxu0 0.0
    %501 = vmatpush1.msra.mxu0 0.0
    %502 = vmatprep.subr.mxu0 0.0
    %503 = vmatpush1.msra.mxu0 0.0
    %504 = vmatprep.subr.mxu0 0.0
    %505 = vmatpush1.msra.mxu0 0.0
    %506 = vmatprep.subr.mxu0 0.0
    %507 = vmatpush1.msra.mxu0 0.0
    %508 = vmatprep.subr.mxu0 0.0
    %509 = vmatpush1.msra.mxu0 0.0
    %510 = vmatprep.mubr.f32.mxu0 0.0
    %511 = vmatmul.mubr.f32.gmra.mrb[0].mxu0 %v444
    %v512 = vpop.f32.mrb[0].mxu0
    %v513 = vadd.f32 0.0, %v512
    %v514 = vpop.f32.mrb[0].mxu0
    %v515 = vadd.f32 0.0, %v514
    %516 = vdwg.mxu0
    %518 = vrot.lane.b32.xlu0 %v413, 32
    %v519 = vpop.permute.xlu0 %518
    %v520 = vsel %vm131, %v519, 0
    %522 = vmatprep.subr.mxu0 0.0
    %523 = vmatpush1.msra.mxu0 %v36
    %524 = vmatprep.subr.mxu0 0.0
    %525 = vmatpush1.msra.mxu0 %v37
    %526 = vmatprep.subr.mxu0 0.0
    %527 = vmatpush1.msra.mxu0 %v38
    %528 = vmatprep.subr.mxu0 0.0
    %529 = vmatpush1.msra.mxu0 %v39
    %530 = vmatprep.subr.mxu0 0.0
    %531 = vmatpush1.msra.mxu0 0.0
    %532 = vmatprep.subr.mxu0 0.0
    %533 = vmatpush1.msra.mxu0 0.0
    %534 = vmatprep.subr.mxu0 0.0
    %535 = vmatpush1.msra.mxu0 0.0
    %536 = vmatprep.subr.mxu0 0.0
    %537 = vmatpush1.msra.mxu0 0.0
    %538 = vmatprep.subr.mxu0 0.0
    %539 = vmatpush1.msra.mxu0 0.0
    %540 = vmatprep.subr.mxu0 0.0
    %541 = vmatpush1.msra.mxu0 0.0
    %542 = vmatprep.subr.mxu0 0.0
    %543 = vmatpush1.msra.mxu0 0.0
    %544 = vmatprep.subr.mxu0 0.0
    %545 = vmatpush1.msra.mxu0 0.0
    %546 = vmatprep.subr.mxu0 0.0
    %547 = vmatpush1.msra.mxu0 0.0
    %548 = vmatprep.subr.mxu0 0.0
    %549 = vmatpush1.msra.mxu0 0.0
    %550 = vmatprep.subr.mxu0 0.0
    %551 = vmatpush1.msra.mxu0 0.0
    %552 = vmatprep.subr.mxu0 0.0
    %553 = vmatpush1.msra.mxu0 0.0
    %554 = vmatprep.subr.mxu0 0.0
    %555 = vmatpush1.msra.mxu0 0.0
    %556 = vmatprep.subr.mxu0 0.0
    %557 = vmatpush1.msra.mxu0 0.0
    %558 = vmatprep.subr.mxu0 0.0
    %559 = vmatpush1.msra.mxu0 0.0
    %560 = vmatprep.subr.mxu0 0.0
    %561 = vmatpush1.msra.mxu0 0.0
    %562 = vmatprep.subr.mxu0 0.0
    %563 = vmatpush1.msra.mxu0 0.0
    %564 = vmatprep.subr.mxu0 0.0
    %565 = vmatpush1.msra.mxu0 0.0
    %566 = vmatprep.subr.mxu0 0.0
    %567 = vmatpush1.msra.mxu0 0.0
    %568 = vmatprep.subr.mxu0 0.0
    %569 = vmatpush1.msra.mxu0 0.0
    %570 = vmatprep.subr.mxu0 0.0
    %571 = vmatpush1.msra.mxu0 0.0
    %572 = vmatprep.subr.mxu0 0.0
    %573 = vmatpush1.msra.mxu0 0.0
    %574 = vmatprep.subr.mxu0 0.0
    %575 = vmatpush1.msra.mxu0 0.0
    %576 = vmatprep.subr.mxu0 0.0
    %577 = vmatpush1.msra.mxu0 0.0
    %578 = vmatprep.subr.mxu0 0.0
    %579 = vmatpush1.msra.mxu0 0.0
    %580 = vmatprep.subr.mxu0 0.0
    %581 = vmatpush1.msra.mxu0 0.0
    %582 = vmatprep.subr.mxu0 0.0
    %583 = vmatpush1.msra.mxu0 0.0
    %584 = vmatprep.subr.mxu0 0.0
    %585 = vmatpush1.msra.mxu0 0.0
    %586 = vmatprep.mubr.f32.mxu0 0.0
    %587 = vmatmul.mubr.f32.gmra.mrb[0].mxu0 %v520
    %v588 = vpop.f32.mrb[0].mxu0
    %v589 = vadd.f32 0.0, %v588
    %v590 = vpop.f32.mrb[0].mxu0
    %591 = vdwg.mxu0
    %v592 = vadd.f32 %v513, %v589
    %v593 = vadd.f32 %v592, %v44
    %v594 = vxor.u32 %v593, 2147483648
    %v595 = vmul.f32 %v594, 1.442695
    %v596 = vpow.pop %v595
    %v597 = vadd.f32 %v596, 1.0
    %v598 = vrcp.pop %v597
    %v599 = vmul.f32 1.0, %v598
    %v600 = vtanh.pop %v593
    %v601 = vmul.f32 %v599, %v407
    %603 = vrot.lane.b32.xlu0 %v600, 64
    %v604 = vpop.permute.xlu0 %603
    %v606 = vmul.f32 %v599, %v604
    %608 = vrot.lane.b32.xlu0 %v606, 32
    %v609 = vpop.permute.xlu0 %608
    %v611 = vadd.f32 %v601, %v609
    %v612 = vtanh.pop %v611
    %614 = vrot.lane.b32.xlu0 %v612, 64
    %v615 = vpop.permute.xlu0 %614
    %v617 = vmul.f32 %v599, %v615
    %s618 = scalar_lea.vmem [#allocation2], 4
    %v619 = vld [vmem:[%s618] sm:$0x3]
    %v620 = vadd.f32 %v619, %v515
    %v621 = vxor.u32 %v620, 2147483648
    %v622 = vmul.f32 %v621, 1.442695
    %v623 = vpow.pop %v622
    %v624 = vadd.f32 %v623, 1.0
    %v625 = vrcp.pop %v624
    %v626 = vmul.f32 1.0, %v625
    %v627 = vtanh.pop %v620
    %v628 = vmul.f32 %v626, %v434
    %630 = vrot.lane.b32.xlu0 %v627, 64
    %v631 = vpop.permute.xlu0 %630
    %v633 = vmul.f32 %v626, %v631
    %635 = vrot.lane.b32.xlu0 %v633, 32
    %v636 = vpop.permute.xlu0 %635
    %v638 = vadd.f32 %v628, %v636
    %v639 = vtanh.pop %v638
    %641 = vrot.lane.b32.xlu0 %v639, 64
    %v642 = vpop.permute.xlu0 %641
    %v644 = vmul.f32 %v626, %v642
    %646 = vrot.lane.b32.xlu0 %v644, 32
    %v647 = vpop.permute.xlu0 %646
    %v648 = vsel %vm131, %v647, 0
    %650 = vmatprep.subr.mxu0 %v29
    %651 = vmatpush1.msra.mxu0 %v28
    %652 = vmatprep.subr.mxu0 %v31
    %653 = vmatpush1.msra.mxu0 %v30
    %654 = vmatprep.subr.mxu0 %v33
    %655 = vmatpush1.msra.mxu0 %v32
    %656 = vmatprep.subr.mxu0 %v35
    %657 = vmatpush1.msra.mxu0 %v34
    %658 = vmatprep.subr.mxu0 0.0
    %659 = vmatpush1.msra.mxu0 0.0
    %660 = vmatprep.subr.mxu0 0.0
    %661 = vmatpush1.msra.mxu0 0.0
    %662 = vmatprep.subr.mxu0 0.0
    %663 = vmatpush1.msra.mxu0 0.0
    %664 = vmatprep.subr.mxu0 0.0
    %665 = vmatpush1.msra.mxu0 0.0
    %666 = vmatprep.subr.mxu0 0.0
    %667 = vmatpush1.msra.mxu0 0.0
    %668 = vmatprep.subr.mxu0 0.0
    %669 = vmatpush1.msra.mxu0 0.0
    %670 = vmatprep.subr.mxu0 0.0
    %671 = vmatpush1.msra.mxu0 0.0
    %672 = vmatprep.subr.mxu0 0.0
    %673 = vmatpush1.msra.mxu0 0.0
    %674 = vmatprep.subr.mxu0 0.0
    %675 = vmatpush1.msra.mxu0 0.0
    %676 = vmatprep.subr.mxu0 0.0
    %677 = vmatpush1.msra.mxu0 0.0
    %678 = vmatprep.subr.mxu0 0.0
    %679 = vmatpush1.msra.mxu0 0.0
    %680 = vmatprep.subr.mxu0 0.0
    %681 = vmatpush1.msra.mxu0 0.0
    %682 = vmatprep.subr.mxu0 0.0
    %683 = vmatpush1.msra.mxu0 0.0
    %684 = vmatprep.subr.mxu0 0.0
    %685 = vmatpush1.msra.mxu0 0.0
    %686 = vmatprep.subr.mxu0 0.0
    %687 = vmatpush1.msra.mxu0 0.0
    %688 = vmatprep.subr.mxu0 0.0
    %689 = vmatpush1.msra.mxu0 0.0
    %690 = vmatprep.subr.mxu0 0.0
    %691 = vmatpush1.msra.mxu0 0.0
    %692 = vmatprep.subr.mxu0 0.0
    %693 = vmatpush1.msra.mxu0 0.0
    %694 = vmatprep.subr.mxu0 0.0
    %695 = vmatpush1.msra.mxu0 0.0
    %696 = vmatprep.subr.mxu0 0.0
    %697 = vmatpush1.msra.mxu0 0.0
    %698 = vmatprep.subr.mxu0 0.0
    %699 = vmatpush1.msra.mxu0 0.0
    %700 = vmatprep.subr.mxu0 0.0
    %701 = vmatpush1.msra.mxu0 0.0
    %702 = vmatprep.subr.mxu0 0.0
    %703 = vmatpush1.msra.mxu0 0.0
    %704 = vmatprep.subr.mxu0 0.0
    %705 = vmatpush1.msra.mxu0 0.0
    %706 = vmatprep.subr.mxu0 0.0
    %707 = vmatpush1.msra.mxu0 0.0
    %708 = vmatprep.subr.mxu0 0.0
    %709 = vmatpush1.msra.mxu0 0.0
    %710 = vmatprep.subr.mxu0 0.0
    %711 = vmatpush1.msra.mxu0 0.0
    %712 = vmatprep.subr.mxu0 0.0
    %713 = vmatpush1.msra.mxu0 0.0
    %714 = vmatprep.mubr.f32.mxu0 0.0
    %715 = vmatmul.mubr.f32.gmra.mrb[0].mxu0 %v648
    %v716 = vpop.f32.mrb[0].mxu0
    %v717 = vadd.f32 0.0, %v716
    %v718 = vpop.f32.mrb[0].mxu0
    %v719 = vadd.f32 0.0, %v718
    %720 = vdwg.mxu0
    %722 = vrot.lane.b32.xlu0 %v617, 32
    %v723 = vpop.permute.xlu0 %722
    %v724 = vsel %vm131, %v723, 0
    %726 = vmatprep.subr.mxu0 0.0
    %727 = vmatpush1.msra.mxu0 %v36
    %728 = vmatprep.subr.mxu0 0.0
    %729 = vmatpush1.msra.mxu0 %v37
    %730 = vmatprep.subr.mxu0 0.0
    %731 = vmatpush1.msra.mxu0 %v38
    %732 = vmatprep.subr.mxu0 0.0
    %733 = vmatpush1.msra.mxu0 %v39
    %734 = vmatprep.subr.mxu0 0.0
    %735 = vmatpush1.msra.mxu0 0.0
    %736 = vmatprep.subr.mxu0 0.0
    %737 = vmatpush1.msra.mxu0 0.0
    %738 = vmatprep.subr.mxu0 0.0
    %739 = vmatpush1.msra.mxu0 0.0
    %740 = vmatprep.subr.mxu0 0.0
    %741 = vmatpush1.msra.mxu0 0.0
    %742 = vmatprep.subr.mxu0 0.0
    %743 = vmatpush1.msra.mxu0 0.0
    %744 = vmatprep.subr.mxu0 0.0
    %745 = vmatpush1.msra.mxu0 0.0
    %746 = vmatprep.subr.mxu0 0.0
    %747 = vmatpush1.msra.mxu0 0.0
    %748 = vmatprep.subr.mxu0 0.0
    %749 = vmatpush1.msra.mxu0 0.0
    %750 = vmatprep.subr.mxu0 0.0
    %751 = vmatpush1.msra.mxu0 0.0
    %752 = vmatprep.subr.mxu0 0.0
    %753 = vmatpush1.msra.mxu0 0.0
    %754 = vmatprep.subr.mxu0 0.0
    %755 = vmatpush1.msra.mxu0 0.0
    %756 = vmatprep.subr.mxu0 0.0
    %757 = vmatpush1.msra.mxu0 0.0
    %758 = vmatprep.subr.mxu0 0.0
    %759 = vmatpush1.msra.mxu0 0.0
    %760 = vmatprep.subr.mxu0 0.0
    %761 = vmatpush1.msra.mxu0 0.0
    %762 = vmatprep.subr.mxu0 0.0
    %763 = vmatpush1.msra.mxu0 0.0
    %764 = vmatprep.subr.mxu0 0.0
    %765 = vmatpush1.msra.mxu0 0.0
    %766 = vmatprep.subr.mxu0 0.0
    %767 = vmatpush1.msra.mxu0 0.0
    %768 = vmatprep.subr.mxu0 0.0
    %769 = vmatpush1.msra.mxu0 0.0
    %770 = vmatprep.subr.mxu0 0.0
    %771 = vmatpush1.msra.mxu0 0.0
    %772 = vmatprep.subr.mxu0 0.0
    %773 = vmatpush1.msra.mxu0 0.0
    %774 = vmatprep.subr.mxu0 0.0
    %775 = vmatpush1.msra.mxu0 0.0
    %776 = vmatprep.subr.mxu0 0.0
    %777 = vmatpush1.msra.mxu0 0.0
    %778 = vmatprep.subr.mxu0 0.0
    %779 = vmatpush1.msra.mxu0 0.0
    %780 = vmatprep.subr.mxu0 0.0
    %781 = vmatpush1.msra.mxu0 0.0
    %782 = vmatprep.subr.mxu0 0.0
    %783 = vmatpush1.msra.mxu0 0.0
    %784 = vmatprep.subr.mxu0 0.0
    %785 = vmatpush1.msra.mxu0 0.0
    %786 = vmatprep.subr.mxu0 0.0
    %787 = vmatpush1.msra.mxu0 0.0
    %788 = vmatprep.subr.mxu0 0.0
    %789 = vmatpush1.msra.mxu0 0.0
    %790 = vmatprep.mubr.f32.mxu0 0.0
    %791 = vmatmul.mubr.f32.gmra.mrb[0].mxu0 %v724
    %v792 = vpop.f32.mrb[0].mxu0
    %v793 = vadd.f32 0.0, %v792
    %v794 = vpop.f32.mrb[0].mxu0
    %795 = vdwg.mxu0
    %v796 = vadd.f32 %v717, %v793
    %v797 = vadd.f32 %v796, %v44
    %v798 = vxor.u32 %v797, 2147483648
    %v799 = vmul.f32 %v798, 1.442695
    %v800 = vpow.pop %v799
    %v801 = vadd.f32 %v800, 1.0
    %v802 = vrcp.pop %v801
    %v803 = vmul.f32 1.0, %v802
    %v804 = vtanh.pop %v797
    %v805 = vmul.f32 %v803, %v611
    %807 = vrot.lane.b32.xlu0 %v804, 64
    %v808 = vpop.permute.xlu0 %807
    %v810 = vmul.f32 %v803, %v808
    %812 = vrot.lane.b32.xlu0 %v810, 32
    %v813 = vpop.permute.xlu0 %812
    %v815 = vadd.f32 %v805, %v813
    %v816 = vtanh.pop %v815
    %818 = vrot.lane.b32.xlu0 %v816, 64
    %v819 = vpop.permute.xlu0 %818
    %v821 = vmul.f32 %v803, %v819
    %s822 = scalar_lea.vmem [#allocation2], 6
    %v823 = vld [vmem:[%s822] sm:$0x3]
    %v824 = vadd.f32 %v823, %v719
    %v825 = vxor.u32 %v824, 2147483648
    %v826 = vmul.f32 %v825, 1.442695
    %v827 = vpow.pop %v826
    %v828 = vadd.f32 %v827, 1.0
    %v829 = vrcp.pop %v828
    %v830 = vmul.f32 1.0, %v829
    %v831 = vtanh.pop %v824
    %v832 = vmul.f32 %v830, %v638
    %834 = vrot.lane.b32.xlu0 %v831, 64
    %v835 = vpop.permute.xlu0 %834
    %v837 = vmul.f32 %v830, %v835
    %839 = vrot.lane.b32.xlu0 %v837, 32
    %v840 = vpop.permute.xlu0 %839
    %v842 = vadd.f32 %v832, %v840
    %v843 = vtanh.pop %v842
    %845 = vrot.lane.b32.xlu0 %v843, 64
    %v846 = vpop.permute.xlu0 %845
    %v848 = vmul.f32 %v830, %v846
    %850 = vrot.lane.b32.xlu0 %v848, 32
    %v851 = vpop.permute.xlu0 %850
    %v852 = vsel %vm131, %v851, 0
    %854 = vmatprep.subr.mxu0 %v29
    %855 = vmatpush1.msra.mxu0 %v28
    %856 = vmatprep.subr.mxu0 %v31
    %857 = vmatpush1.msra.mxu0 %v30
    %858 = vmatprep.subr.mxu0 %v33
    %859 = vmatpush1.msra.mxu0 %v32
    %860 = vmatprep.subr.mxu0 %v35
    %861 = vmatpush1.msra.mxu0 %v34
    %862 = vmatprep.subr.mxu0 0.0
    %863 = vmatpush1.msra.mxu0 0.0
    %864 = vmatprep.subr.mxu0 0.0
    %865 = vmatpush1.msra.mxu0 0.0
    %866 = vmatprep.subr.mxu0 0.0
    %867 = vmatpush1.msra.mxu0 0.0
    %868 = vmatprep.subr.mxu0 0.0
    %869 = vmatpush1.msra.mxu0 0.0
    %870 = vmatprep.subr.mxu0 0.0
    %871 = vmatpush1.msra.mxu0 0.0
    %872 = vmatprep.subr.mxu0 0.0
    %873 = vmatpush1.msra.mxu0 0.0
    %874 = vmatprep.subr.mxu0 0.0
    %875 = vmatpush1.msra.mxu0 0.0
    %876 = vmatprep.subr.mxu0 0.0
    %877 = vmatpush1.msra.mxu0 0.0
    %878 = vmatprep.subr.mxu0 0.0
    %879 = vmatpush1.msra.mxu0 0.0
    %880 = vmatprep.subr.mxu0 0.0
    %881 = vmatpush1.msra.mxu0 0.0
    %882 = vmatprep.subr.mxu0 0.0
    %883 = vmatpush1.msra.mxu0 0.0
    %884 = vmatprep.subr.mxu0 0.0
    %885 = vmatpush1.msra.mxu0 0.0
    %886 = vmatprep.subr.mxu0 0.0
    %887 = vmatpush1.msra.mxu0 0.0
    %888 = vmatprep.subr.mxu0 0.0
    %889 = vmatpush1.msra.mxu0 0.0
    %890 = vmatprep.subr.mxu0 0.0
    %891 = vmatpush1.msra.mxu0 0.0
    %892 = vmatprep.subr.mxu0 0.0
    %893 = vmatpush1.msra.mxu0 0.0
    %894 = vmatprep.subr.mxu0 0.0
    %895 = vmatpush1.msra.mxu0 0.0
    %896 = vmatprep.subr.mxu0 0.0
    %897 = vmatpush1.msra.mxu0 0.0
    %898 = vmatprep.subr.mxu0 0.0
    %899 = vmatpush1.msra.mxu0 0.0
    %900 = vmatprep.subr.mxu0 0.0
    %901 = vmatpush1.msra.mxu0 0.0
    %902 = vmatprep.subr.mxu0 0.0
    %903 = vmatpush1.msra.mxu0 0.0
    %904 = vmatprep.subr.mxu0 0.0
    %905 = vmatpush1.msra.mxu0 0.0
    %906 = vmatprep.subr.mxu0 0.0
    %907 = vmatpush1.msra.mxu0 0.0
    %908 = vmatprep.subr.mxu0 0.0
    %909 = vmatpush1.msra.mxu0 0.0
    %910 = vmatprep.subr.mxu0 0.0
    %911 = vmatpush1.msra.mxu0 0.0
    %912 = vmatprep.subr.mxu0 0.0
    %913 = vmatpush1.msra.mxu0 0.0
    %914 = vmatprep.subr.mxu0 0.0
    %915 = vmatpush1.msra.mxu0 0.0
    %916 = vmatprep.subr.mxu0 0.0
    %917 = vmatpush1.msra.mxu0 0.0
    %918 = vmatprep.mubr.f32.mxu0 0.0
    %919 = vmatmul.mubr.f32.gmra.mrb[0].mxu0 %v852
    %v920 = vpop.f32.mrb[0].mxu0
    %v921 = vadd.f32 0.0, %v920
    %v922 = vpop.f32.mrb[0].mxu0
    %v923 = vadd.f32 0.0, %v922
    %924 = vdwg.mxu0
    %926 = vrot.lane.b32.xlu0 %v821, 32
    %v927 = vpop.permute.xlu0 %926
    %v928 = vsel %vm131, %v927, 0
    %930 = vmatprep.subr.mxu0 0.0
    %931 = vmatpush1.msra.mxu0 %v36
    %932 = vmatprep.subr.mxu0 0.0
    %933 = vmatpush1.msra.mxu0 %v37
    %934 = vmatprep.subr.mxu0 0.0
    %935 = vmatpush1.msra.mxu0 %v38
    %936 = vmatprep.subr.mxu0 0.0
    %937 = vmatpush1.msra.mxu0 %v39
    %938 = vmatprep.subr.mxu0 0.0
    %939 = vmatpush1.msra.mxu0 0.0
    %940 = vmatprep.subr.mxu0 0.0
    %941 = vmatpush1.msra.mxu0 0.0
    %942 = vmatprep.subr.mxu0 0.0
    %943 = vmatpush1.msra.mxu0 0.0
    %944 = vmatprep.subr.mxu0 0.0
    %945 = vmatpush1.msra.mxu0 0.0
    %946 = vmatprep.subr.mxu0 0.0
    %947 = vmatpush1.msra.mxu0 0.0
    %948 = vmatprep.subr.mxu0 0.0
    %949 = vmatpush1.msra.mxu0 0.0
    %950 = vmatprep.subr.mxu0 0.0
    %951 = vmatpush1.msra.mxu0 0.0
    %952 = vmatprep.subr.mxu0 0.0
    %953 = vmatpush1.msra.mxu0 0.0
    %954 = vmatprep.subr.mxu0 0.0
    %955 = vmatpush1.msra.mxu0 0.0
    %956 = vmatprep.subr.mxu0 0.0
    %957 = vmatpush1.msra.mxu0 0.0
    %958 = vmatprep.subr.mxu0 0.0
    %959 = vmatpush1.msra.mxu0 0.0
    %960 = vmatprep.subr.mxu0 0.0
    %961 = vmatpush1.msra.mxu0 0.0
    %962 = vmatprep.subr.mxu0 0.0
    %963 = vmatpush1.msra.mxu0 0.0
    %964 = vmatprep.subr.mxu0 0.0
    %965 = vmatpush1.msra.mxu0 0.0
    %966 = vmatprep.subr.mxu0 0.0
    %967 = vmatpush1.msra.mxu0 0.0
    %968 = vmatprep.subr.mxu0 0.0
    %969 = vmatpush1.msra.mxu0 0.0
    %970 = vmatprep.subr.mxu0 0.0
    %971 = vmatpush1.msra.mxu0 0.0
    %972 = vmatprep.subr.mxu0 0.0
    %973 = vmatpush1.msra.mxu0 0.0
    %974 = vmatprep.subr.mxu0 0.0
    %975 = vmatpush1.msra.mxu0 0.0
    %976 = vmatprep.subr.mxu0 0.0
    %977 = vmatpush1.msra.mxu0 0.0
    %978 = vmatprep.subr.mxu0 0.0
    %979 = vmatpush1.msra.mxu0 0.0
    %980 = vmatprep.subr.mxu0 0.0
    %981 = vmatpush1.msra.mxu0 0.0
    %982 = vmatprep.subr.mxu0 0.0
    %983 = vmatpush1.msra.mxu0 0.0
    %984 = vmatprep.subr.mxu0 0.0
    %985 = vmatpush1.msra.mxu0 0.0
    %986 = vmatprep.subr.mxu0 0.0
    %987 = vmatpush1.msra.mxu0 0.0
    %988 = vmatprep.subr.mxu0 0.0
    %989 = vmatpush1.msra.mxu0 0.0
    %990 = vmatprep.subr.mxu0 0.0
    %991 = vmatpush1.msra.mxu0 0.0
    %992 = vmatprep.subr.mxu0 0.0
    %993 = vmatpush1.msra.mxu0 0.0
    %994 = vmatprep.mubr.f32.mxu0 0.0
    %995 = vmatmul.mubr.f32.gmra.mrb[0].mxu0 %v928
    %v996 = vpop.f32.mrb[0].mxu0
    %v997 = vadd.f32 0.0, %v996
    %v998 = vpop.f32.mrb[0].mxu0
    %999 = vdwg.mxu0
    %v1000 = vadd.f32 %v921, %v997
    %v1001 = vadd.f32 %v1000, %v44
    %v1002 = vxor.u32 %v1001, 2147483648
    %v1003 = vmul.f32 %v1002, 1.442695
    %v1004 = vpow.pop %v1003
    %v1005 = vadd.f32 %v1004, 1.0
    %v1006 = vrcp.pop %v1005
    %v1007 = vmul.f32 1.0, %v1006
    %v1008 = vtanh.pop %v1001
    %v1009 = vmul.f32 %v1007, %v815
    %1011 = vrot.lane.b32.xlu0 %v1008, 64
    %v1012 = vpop.permute.xlu0 %1011
    %v1014 = vmul.f32 %v1007, %v1012
    %1016 = vrot.lane.b32.xlu0 %v1014, 32
    %v1017 = vpop.permute.xlu0 %1016
    %v1019 = vadd.f32 %v1009, %v1017
    %v1020 = vtanh.pop %v1019
    %1022 = vrot.lane.b32.xlu0 %v1020, 64
    %v1023 = vpop.permute.xlu0 %1022
    %v1025 = vmul.f32 %v1007, %v1023
    %s1026 = scalar_lea.vmem [#allocation2], 8
    %v1027 = vld [vmem:[%s1026] sm:$0x3]
    %v1028 = vadd.f32 %v1027, %v923
    %v1029 = vxor.u32 %v1028, 2147483648
    %v1030 = vmul.f32 %v1029, 1.442695
    %v1031 = vpow.pop %v1030
    %v1032 = vadd.f32 %v1031, 1.0
    %v1033 = vrcp.pop %v1032
    %v1034 = vmul.f32 1.0, %v1033
    %v1035 = vtanh.pop %v1028
    %v1036 = vmul.f32 %v1034, %v842
    %1038 = vrot.lane.b32.xlu0 %v1035, 64
    %v1039 = vpop.permute.xlu0 %1038
    %v1041 = vmul.f32 %v1034, %v1039
    %1043 = vrot.lane.b32.xlu0 %v1041, 32
    %v1044 = vpop.permute.xlu0 %1043
    %v1046 = vadd.f32 %v1036, %v1044
    %v1047 = vtanh.pop %v1046
    %1049 = vrot.lane.b32.xlu0 %v1047, 64
    %v1050 = vpop.permute.xlu0 %1049
    %v1052 = vmul.f32 %v1034, %v1050
    %1054 = vrot.lane.b32.xlu0 %v1052, 32
    %v1055 = vpop.permute.xlu0 %1054
    %v1056 = vsel %vm131, %v1055, 0
    %1058 = vmatprep.subr.mxu0 %v29
    %1059 = vmatpush1.msra.mxu0 %v28
    %1060 = vmatprep.subr.mxu0 %v31
    %1061 = vmatpush1.msra.mxu0 %v30
    %1062 = vmatprep.subr.mxu0 %v33
    %1063 = vmatpush1.msra.mxu0 %v32
    %1064 = vmatprep.subr.mxu0 %v35
    %1065 = vmatpush1.msra.mxu0 %v34
    %1066 = vmatprep.subr.mxu0 0.0
    %1067 = vmatpush1.msra.mxu0 0.0
    %1068 = vmatprep.subr.mxu0 0.0
    %1069 = vmatpush1.msra.mxu0 0.0
    %1070 = vmatprep.subr.mxu0 0.0
    %1071 = vmatpush1.msra.mxu0 0.0
    %1072 = vmatprep.subr.mxu0 0.0
    %1073 = vmatpush1.msra.mxu0 0.0
    %1074 = vmatprep.subr.mxu0 0.0
    %1075 = vmatpush1.msra.mxu0 0.0
    %1076 = vmatprep.subr.mxu0 0.0
    %1077 = vmatpush1.msra.mxu0 0.0
    %1078 = vmatprep.subr.mxu0 0.0
    %1079 = vmatpush1.msra.mxu0 0.0
    %1080 = vmatprep.subr.mxu0 0.0
    %1081 = vmatpush1.msra.mxu0 0.0
    %1082 = vmatprep.subr.mxu0 0.0
    %1083 = vmatpush1.msra.mxu0 0.0
    %1084 = vmatprep.subr.mxu0 0.0
    %1085 = vmatpush1.msra.mxu0 0.0
    %1086 = vmatprep.subr.mxu0 0.0
    %1087 = vmatpush1.msra.mxu0 0.0
    %1088 = vmatprep.subr.mxu0 0.0
    %1089 = vmatpush1.msra.mxu0 0.0
    %1090 = vmatprep.subr.mxu0 0.0
    %1091 = vmatpush1.msra.mxu0 0.0
    %1092 = vmatprep.subr.mxu0 0.0
    %1093 = vmatpush1.msra.mxu0 0.0
    %1094 = vmatprep.subr.mxu0 0.0
    %1095 = vmatpush1.msra.mxu0 0.0
    %1096 = vmatprep.subr.mxu0 0.0
    %1097 = vmatpush1.msra.mxu0 0.0
    %1098 = vmatprep.subr.mxu0 0.0
    %1099 = vmatpush1.msra.mxu0 0.0
    %1100 = vmatprep.subr.mxu0 0.0
    %1101 = vmatpush1.msra.mxu0 0.0
    %1102 = vmatprep.subr.mxu0 0.0
    %1103 = vmatpush1.msra.mxu0 0.0
    %1104 = vmatprep.subr.mxu0 0.0
    %1105 = vmatpush1.msra.mxu0 0.0
    %1106 = vmatprep.subr.mxu0 0.0
    %1107 = vmatpush1.msra.mxu0 0.0
    %1108 = vmatprep.subr.mxu0 0.0
    %1109 = vmatpush1.msra.mxu0 0.0
    %1110 = vmatprep.subr.mxu0 0.0
    %1111 = vmatpush1.msra.mxu0 0.0
    %1112 = vmatprep.subr.mxu0 0.0
    %1113 = vmatpush1.msra.mxu0 0.0
    %1114 = vmatprep.subr.mxu0 0.0
    %1115 = vmatpush1.msra.mxu0 0.0
    %1116 = vmatprep.subr.mxu0 0.0
    %1117 = vmatpush1.msra.mxu0 0.0
    %1118 = vmatprep.subr.mxu0 0.0
    %1119 = vmatpush1.msra.mxu0 0.0
    %1120 = vmatprep.subr.mxu0 0.0
    %1121 = vmatpush1.msra.mxu0 0.0
    %1122 = vmatprep.mubr.f32.mxu0 0.0
    %1123 = vmatmul.mubr.f32.gmra.mrb[0].mxu0 %v1056
    %v1124 = vpop.f32.mrb[0].mxu0
    %v1125 = vadd.f32 0.0, %v1124
    %v1126 = vpop.f32.mrb[0].mxu0
    %v1127 = vadd.f32 0.0, %v1126
    %1128 = vdwg.mxu0
    %1130 = vrot.lane.b32.xlu0 %v1025, 32
    %v1131 = vpop.permute.xlu0 %1130
    %v1132 = vsel %vm131, %v1131, 0
    %1134 = vmatprep.subr.mxu0 0.0
    %1135 = vmatpush1.msra.mxu0 %v36
    %1136 = vmatprep.subr.mxu0 0.0
    %1137 = vmatpush1.msra.mxu0 %v37
    %1138 = vmatprep.subr.mxu0 0.0
    %1139 = vmatpush1.msra.mxu0 %v38
    %1140 = vmatprep.subr.mxu0 0.0
    %1141 = vmatpush1.msra.mxu0 %v39
    %1142 = vmatprep.subr.mxu0 0.0
    %1143 = vmatpush1.msra.mxu0 0.0
    %1144 = vmatprep.subr.mxu0 0.0
    %1145 = vmatpush1.msra.mxu0 0.0
    %1146 = vmatprep.subr.mxu0 0.0
    %1147 = vmatpush1.msra.mxu0 0.0
    %1148 = vmatprep.subr.mxu0 0.0
    %1149 = vmatpush1.msra.mxu0 0.0
    %1150 = vmatprep.subr.mxu0 0.0
    %1151 = vmatpush1.msra.mxu0 0.0
    %1152 = vmatprep.subr.mxu0 0.0
    %1153 = vmatpush1.msra.mxu0 0.0
    %1154 = vmatprep.subr.mxu0 0.0
    %1155 = vmatpush1.msra.mxu0 0.0
    %1156 = vmatprep.subr.mxu0 0.0
    %1157 = vmatpush1.msra.mxu0 0.0
    %1158 = vmatprep.subr.mxu0 0.0
    %1159 = vmatpush1.msra.mxu0 0.0
    %1160 = vmatprep.subr.mxu0 0.0
    %1161 = vmatpush1.msra.mxu0 0.0
    %1162 = vmatprep.subr.mxu0 0.0
    %1163 = vmatpush1.msra.mxu0 0.0
    %1164 = vmatprep.subr.mxu0 0.0
    %1165 = vmatpush1.msra.mxu0 0.0
    %1166 = vmatprep.subr.mxu0 0.0
    %1167 = vmatpush1.msra.mxu0 0.0
    %1168 = vmatprep.subr.mxu0 0.0
    %1169 = vmatpush1.msra.mxu0 0.0
    %1170 = vmatprep.subr.mxu0 0.0
    %1171 = vmatpush1.msra.mxu0 0.0
    %1172 = vmatprep.subr.mxu0 0.0
    %1173 = vmatpush1.msra.mxu0 0.0
    %1174 = vmatprep.subr.mxu0 0.0
    %1175 = vmatpush1.msra.mxu0 0.0
    %1176 = vmatprep.subr.mxu0 0.0
    %1177 = vmatpush1.msra.mxu0 0.0
    %1178 = vmatprep.subr.mxu0 0.0
    %1179 = vmatpush1.msra.mxu0 0.0
    %1180 = vmatprep.subr.mxu0 0.0
    %1181 = vmatpush1.msra.mxu0 0.0
    %1182 = vmatprep.subr.mxu0 0.0
    %1183 = vmatpush1.msra.mxu0 0.0
    %1184 = vmatprep.subr.mxu0 0.0
    %1185 = vmatpush1.msra.mxu0 0.0
    %1186 = vmatprep.subr.mxu0 0.0
    %1187 = vmatpush1.msra.mxu0 0.0
    %1188 = vmatprep.subr.mxu0 0.0
    %1189 = vmatpush1.msra.mxu0 0.0
    %1190 = vmatprep.subr.mxu0 0.0
    %1191 = vmatpush1.msra.mxu0 0.0
    %1192 = vmatprep.subr.mxu0 0.0
    %1193 = vmatpush1.msra.mxu0 0.0
    %1194 = vmatprep.subr.mxu0 0.0
    %1195 = vmatpush1.msra.mxu0 0.0
    %1196 = vmatprep.subr.mxu0 0.0
    %1197 = vmatpush1.msra.mxu0 0.0
    %1198 = vmatprep.mubr.f32.mxu0 0.0
    %1199 = vmatmul.mubr.f32.gmra.mrb[0].mxu0 %v1132
    %v1200 = vpop.f32.mrb[0].mxu0
    %v1201 = vadd.f32 0.0, %v1200
    %v1202 = vpop.f32.mrb[0].mxu0
    %1203 = vdwg.mxu0
    %v1204 = vadd.f32 %v1125, %v1201
    %v1205 = vadd.f32 %v1204, %v44
    %v1206 = vxor.u32 %v1205, 2147483648
    %v1207 = vmul.f32 %v1206, 1.442695
    %v1208 = vpow.pop %v1207
    %v1209 = vadd.f32 %v1208, 1.0
    %v1210 = vrcp.pop %v1209
    %v1211 = vmul.f32 1.0, %v1210
    %v1212 = vtanh.pop %v1205
    %v1213 = vmul.f32 %v1211, %v1019
    %1215 = vrot.lane.b32.xlu0 %v1212, 64
    %v1216 = vpop.permute.xlu0 %1215
    %v1218 = vmul.f32 %v1211, %v1216
    %1220 = vrot.lane.b32.xlu0 %v1218, 32
    %v1221 = vpop.permute.xlu0 %1220
    %v1223 = vadd.f32 %v1213, %v1221
    %v1224 = vtanh.pop %v1223
    %1226 = vrot.lane.b32.xlu0 %v1224, 64
    %v1227 = vpop.permute.xlu0 %1226
    %v1229 = vmul.f32 %v1211, %v1227
    %s1230 = scalar_lea.vmem [#allocation2], 10
    %v1231 = vld [vmem:[%s1230] sm:$0x3]
    %v1232 = vadd.f32 %v1231, %v1127
    %v1233 = vxor.u32 %v1232, 2147483648
    %v1234 = vmul.f32 %v1233, 1.442695
    %v1235 = vpow.pop %v1234
    %v1236 = vadd.f32 %v1235, 1.0
    %v1237 = vrcp.pop %v1236
    %v1238 = vmul.f32 1.0, %v1237
    %v1239 = vtanh.pop %v1232
    %v1240 = vmul.f32 %v1238, %v1046
    %1242 = vrot.lane.b32.xlu0 %v1239, 64
    %v1243 = vpop.permute.xlu0 %1242
    %v1245 = vmul.f32 %v1238, %v1243
    %1247 = vrot.lane.b32.xlu0 %v1245, 32
    %v1248 = vpop.permute.xlu0 %1247
    %v1250 = vadd.f32 %v1240, %v1248
    %v1251 = vtanh.pop %v1250
    %1253 = vrot.lane.b32.xlu0 %v1251, 64
    %v1254 = vpop.permute.xlu0 %1253
    %v1256 = vmul.f32 %v1238, %v1254
    %1258 = vrot.lane.b32.xlu0 %v1256, 32
    %v1259 = vpop.permute.xlu0 %1258
    %v1260 = vsel %vm131, %v1259, 0
    %1262 = vmatprep.subr.mxu0 %v29
    %1263 = vmatpush1.msra.mxu0 %v28
    %1264 = vmatprep.subr.mxu0 %v31
    %1265 = vmatpush1.msra.mxu0 %v30
    %1266 = vmatprep.subr.mxu0 %v33
    %1267 = vmatpush1.msra.mxu0 %v32
    %1268 = vmatprep.subr.mxu0 %v35
    %1269 = vmatpush1.msra.mxu0 %v34
    %1270 = vmatprep.subr.mxu0 0.0
    %1271 = vmatpush1.msra.mxu0 0.0
    %1272 = vmatprep.subr.mxu0 0.0
    %1273 = vmatpush1.msra.mxu0 0.0
    %1274 = vmatprep.subr.mxu0 0.0
    %1275 = vmatpush1.msra.mxu0 0.0
    %1276 = vmatprep.subr.mxu0 0.0
    %1277 = vmatpush1.msra.mxu0 0.0
    %1278 = vmatprep.subr.mxu0 0.0
    %1279 = vmatpush1.msra.mxu0 0.0
    %1280 = vmatprep.subr.mxu0 0.0
    %1281 = vmatpush1.msra.mxu0 0.0
    %1282 = vmatprep.subr.mxu0 0.0
    %1283 = vmatpush1.msra.mxu0 0.0
    %1284 = vmatprep.subr.mxu0 0.0
    %1285 = vmatpush1.msra.mxu0 0.0
    %1286 = vmatprep.subr.mxu0 0.0
    %1287 = vmatpush1.msra.mxu0 0.0
    %1288 = vmatprep.subr.mxu0 0.0
    %1289 = vmatpush1.msra.mxu0 0.0
    %1290 = vmatprep.subr.mxu0 0.0
    %1291 = vmatpush1.msra.mxu0 0.0
    %1292 = vmatprep.subr.mxu0 0.0
    %1293 = vmatpush1.msra.mxu0 0.0
    %1294 = vmatprep.subr.mxu0 0.0
    %1295 = vmatpush1.msra.mxu0 0.0
    %1296 = vmatprep.subr.mxu0 0.0
    %1297 = vmatpush1.msra.mxu0 0.0
    %1298 = vmatprep.subr.mxu0 0.0
    %1299 = vmatpush1.msra.mxu0 0.0
    %1300 = vmatprep.subr.mxu0 0.0
    %1301 = vmatpush1.msra.mxu0 0.0
    %1302 = vmatprep.subr.mxu0 0.0
    %1303 = vmatpush1.msra.mxu0 0.0
    %1304 = vmatprep.subr.mxu0 0.0
    %1305 = vmatpush1.msra.mxu0 0.0
    %1306 = vmatprep.subr.mxu0 0.0
    %1307 = vmatpush1.msra.mxu0 0.0
    %1308 = vmatprep.subr.mxu0 0.0
    %1309 = vmatpush1.msra.mxu0 0.0
    %1310 = vmatprep.subr.mxu0 0.0
    %1311 = vmatpush1.msra.mxu0 0.0
    %1312 = vmatprep.subr.mxu0 0.0
    %1313 = vmatpush1.msra.mxu0 0.0
    %1314 = vmatprep.subr.mxu0 0.0
    %1315 = vmatpush1.msra.mxu0 0.0
    %1316 = vmatprep.subr.mxu0 0.0
    %1317 = vmatpush1.msra.mxu0 0.0
    %1318 = vmatprep.subr.mxu0 0.0
    %1319 = vmatpush1.msra.mxu0 0.0
    %1320 = vmatprep.subr.mxu0 0.0
    %1321 = vmatpush1.msra.mxu0 0.0
    %1322 = vmatprep.subr.mxu0 0.0
    %1323 = vmatpush1.msra.mxu0 0.0
    %1324 = vmatprep.subr.mxu0 0.0
    %1325 = vmatpush1.msra.mxu0 0.0
    %1326 = vmatprep.mubr.f32.mxu0 0.0
    %1327 = vmatmul.mubr.f32.gmra.mrb[0].mxu0 %v1260
    %v1328 = vpop.f32.mrb[0].mxu0
    %v1329 = vadd.f32 0.0, %v1328
    %v1330 = vpop.f32.mrb[0].mxu0
    %v1331 = vadd.f32 0.0, %v1330
    %1332 = vdwg.mxu0
    %1334 = vrot.lane.b32.xlu0 %v1229, 32
    %v1335 = vpop.permute.xlu0 %1334
    %v1336 = vsel %vm131, %v1335, 0
    %1338 = vmatprep.subr.mxu0 0.0
    %1339 = vmatpush1.msra.mxu0 %v36
    %1340 = vmatprep.subr.mxu0 0.0
    %1341 = vmatpush1.msra.mxu0 %v37
    %1342 = vmatprep.subr.mxu0 0.0
    %1343 = vmatpush1.msra.mxu0 %v38
    %1344 = vmatprep.subr.mxu0 0.0
    %1345 = vmatpush1.msra.mxu0 %v39
    %1346 = vmatprep.subr.mxu0 0.0
    %1347 = vmatpush1.msra.mxu0 0.0
    %1348 = vmatprep.subr.mxu0 0.0
    %1349 = vmatpush1.msra.mxu0 0.0
    %1350 = vmatprep.subr.mxu0 0.0
    %1351 = vmatpush1.msra.mxu0 0.0
    %1352 = vmatprep.subr.mxu0 0.0
    %1353 = vmatpush1.msra.mxu0 0.0
    %1354 = vmatprep.subr.mxu0 0.0
    %1355 = vmatpush1.msra.mxu0 0.0
    %1356 = vmatprep.subr.mxu0 0.0
    %1357 = vmatpush1.msra.mxu0 0.0
    %1358 = vmatprep.subr.mxu0 0.0
    %1359 = vmatpush1.msra.mxu0 0.0
    %1360 = vmatprep.subr.mxu0 0.0
    %1361 = vmatpush1.msra.mxu0 0.0
    %1362 = vmatprep.subr.mxu0 0.0
    %1363 = vmatpush1.msra.mxu0 0.0
    %1364 = vmatprep.subr.mxu0 0.0
    %1365 = vmatpush1.msra.mxu0 0.0
    %1366 = vmatprep.subr.mxu0 0.0
    %1367 = vmatpush1.msra.mxu0 0.0
    %1368 = vmatprep.subr.mxu0 0.0
    %1369 = vmatpush1.msra.mxu0 0.0
    %1370 = vmatprep.subr.mxu0 0.0
    %1371 = vmatpush1.msra.mxu0 0.0
    %1372 = vmatprep.subr.mxu0 0.0
    %1373 = vmatpush1.msra.mxu0 0.0
    %1374 = vmatprep.subr.mxu0 0.0
    %1375 = vmatpush1.msra.mxu0 0.0
    %1376 = vmatprep.subr.mxu0 0.0
    %1377 = vmatpush1.msra.mxu0 0.0
    %1378 = vmatprep.subr.mxu0 0.0
    %1379 = vmatpush1.msra.mxu0 0.0
    %1380 = vmatprep.subr.mxu0 0.0
    %1381 = vmatpush1.msra.mxu0 0.0
    %1382 = vmatprep.subr.mxu0 0.0
    %1383 = vmatpush1.msra.mxu0 0.0
    %1384 = vmatprep.subr.mxu0 0.0
    %1385 = vmatpush1.msra.mxu0 0.0
    %1386 = vmatprep.subr.mxu0 0.0
    %1387 = vmatpush1.msra.mxu0 0.0
    %1388 = vmatprep.subr.mxu0 0.0
    %1389 = vmatpush1.msra.mxu0 0.0
    %1390 = vmatprep.subr.mxu0 0.0
    %1391 = vmatpush1.msra.mxu0 0.0
    %1392 = vmatprep.subr.mxu0 0.0
    %1393 = vmatpush1.msra.mxu0 0.0
    %1394 = vmatprep.subr.mxu0 0.0
    %1395 = vmatpush1.msra.mxu0 0.0
    %1396 = vmatprep.subr.mxu0 0.0
    %1397 = vmatpush1.msra.mxu0 0.0
    %1398 = vmatprep.subr.mxu0 0.0
    %1399 = vmatpush1.msra.mxu0 0.0
    %1400 = vmatprep.subr.mxu0 0.0
    %1401 = vmatpush1.msra.mxu0 0.0
    %1402 = vmatprep.mubr.f32.mxu0 0.0
    %1403 = vmatmul.mubr.f32.gmra.mrb[0].mxu0 %v1336
    %v1404 = vpop.f32.mrb[0].mxu0
    %v1405 = vadd.f32 0.0, %v1404
    %v1406 = vpop.f32.mrb[0].mxu0
    %1407 = vdwg.mxu0
    %v1408 = vadd.f32 %v1329, %v1405
    %v1409 = vadd.f32 %v1408, %v44
    %v1410 = vxor.u32 %v1409, 2147483648
    %v1411 = vmul.f32 %v1410, 1.442695
    %v1412 = vpow.pop %v1411
    %v1413 = vadd.f32 %v1412, 1.0
    %v1414 = vrcp.pop %v1413
    %v1415 = vmul.f32 1.0, %v1414
    %v1416 = vtanh.pop %v1409
    %v1417 = vmul.f32 %v1415, %v1223
    %1419 = vrot.lane.b32.xlu0 %v1416, 64
    %v1420 = vpop.permute.xlu0 %1419
    %v1422 = vmul.f32 %v1415, %v1420
    %1424 = vrot.lane.b32.xlu0 %v1422, 32
    %v1425 = vpop.permute.xlu0 %1424
    %v1427 = vadd.f32 %v1417, %v1425
    %v1428 = vtanh.pop %v1427
    %1430 = vrot.lane.b32.xlu0 %v1428, 64
    %v1431 = vpop.permute.xlu0 %1430
    %v1433 = vmul.f32 %v1415, %v1431
    %s1434 = scalar_lea.vmem [#allocation2], 12
    %v1435 = vld [vmem:[%s1434] sm:$0x3]
    %v1436 = vadd.f32 %v1435, %v1331
    %v1437 = vxor.u32 %v1436, 2147483648
    %v1438 = vmul.f32 %v1437, 1.442695
    %v1439 = vpow.pop %v1438
    %v1440 = vadd.f32 %v1439, 1.0
    %v1441 = vrcp.pop %v1440
    %v1442 = vmul.f32 1.0, %v1441
    %v1443 = vtanh.pop %v1436
    %v1444 = vmul.f32 %v1442, %v1250
    %1446 = vrot.lane.b32.xlu0 %v1443, 64
    %v1447 = vpop.permute.xlu0 %1446
    %v1449 = vmul.f32 %v1442, %v1447
    %1451 = vrot.lane.b32.xlu0 %v1449, 32
    %v1452 = vpop.permute.xlu0 %1451
    %v1454 = vadd.f32 %v1444, %v1452
    %v1455 = vtanh.pop %v1454
    %1457 = vrot.lane.b32.xlu0 %v1455, 64
    %v1458 = vpop.permute.xlu0 %1457
    %v1460 = vmul.f32 %v1442, %v1458
    %1462 = vrot.lane.b32.xlu0 %v1460, 32
    %v1463 = vpop.permute.xlu0 %1462
    %v1464 = vsel %vm131, %v1463, 0
    %1466 = vmatprep.subr.mxu0 %v29
    %1467 = vmatpush1.msra.mxu0 %v28
    %1468 = vmatprep.subr.mxu0 %v31
    %1469 = vmatpush1.msra.mxu0 %v30
    %1470 = vmatprep.subr.mxu0 %v33
    %1471 = vmatpush1.msra.mxu0 %v32
    %1472 = vmatprep.subr.mxu0 %v35
    %1473 = vmatpush1.msra.mxu0 %v34
    %1474 = vmatprep.subr.mxu0 0.0
    %1475 = vmatpush1.msra.mxu0 0.0
    %1476 = vmatprep.subr.mxu0 0.0
    %1477 = vmatpush1.msra.mxu0 0.0
    %1478 = vmatprep.subr.mxu0 0.0
    %1479 = vmatpush1.msra.mxu0 0.0
    %1480 = vmatprep.subr.mxu0 0.0
    %1481 = vmatpush1.msra.mxu0 0.0
    %1482 = vmatprep.subr.mxu0 0.0
    %1483 = vmatpush1.msra.mxu0 0.0
    %1484 = vmatprep.subr.mxu0 0.0
    %1485 = vmatpush1.msra.mxu0 0.0
    %1486 = vmatprep.subr.mxu0 0.0
    %1487 = vmatpush1.msra.mxu0 0.0
    %1488 = vmatprep.subr.mxu0 0.0
    %1489 = vmatpush1.msra.mxu0 0.0
    %1490 = vmatprep.subr.mxu0 0.0
    %1491 = vmatpush1.msra.mxu0 0.0
    %1492 = vmatprep.subr.mxu0 0.0
    %1493 = vmatpush1.msra.mxu0 0.0
    %1494 = vmatprep.subr.mxu0 0.0
    %1495 = vmatpush1.msra.mxu0 0.0
    %1496 = vmatprep.subr.mxu0 0.0
    %1497 = vmatpush1.msra.mxu0 0.0
    %1498 = vmatprep.subr.mxu0 0.0
    %1499 = vmatpush1.msra.mxu0 0.0
    %1500 = vmatprep.subr.mxu0 0.0
    %1501 = vmatpush1.msra.mxu0 0.0
    %1502 = vmatprep.subr.mxu0 0.0
    %1503 = vmatpush1.msra.mxu0 0.0
    %1504 = vmatprep.subr.mxu0 0.0
    %1505 = vmatpush1.msra.mxu0 0.0
    %1506 = vmatprep.subr.mxu0 0.0
    %1507 = vmatpush1.msra.mxu0 0.0
    %1508 = vmatprep.subr.mxu0 0.0
    %1509 = vmatpush1.msra.mxu0 0.0
    %1510 = vmatprep.subr.mxu0 0.0
    %1511 = vmatpush1.msra.mxu0 0.0
    %1512 = vmatprep.subr.mxu0 0.0
    %1513 = vmatpush1.msra.mxu0 0.0
    %1514 = vmatprep.subr.mxu0 0.0
    %1515 = vmatpush1.msra.mxu0 0.0
    %1516 = vmatprep.subr.mxu0 0.0
    %1517 = vmatpush1.msra.mxu0 0.0
    %1518 = vmatprep.subr.mxu0 0.0
    %1519 = vmatpush1.msra.mxu0 0.0
    %1520 = vmatprep.subr.mxu0 0.0
    %1521 = vmatpush1.msra.mxu0 0.0
    %1522 = vmatprep.subr.mxu0 0.0
    %1523 = vmatpush1.msra.mxu0 0.0
    %1524 = vmatprep.subr.mxu0 0.0
    %1525 = vmatpush1.msra.mxu0 0.0
    %1526 = vmatprep.subr.mxu0 0.0
    %1527 = vmatpush1.msra.mxu0 0.0
    %1528 = vmatprep.subr.mxu0 0.0
    %1529 = vmatpush1.msra.mxu0 0.0
    %1530 = vmatprep.mubr.f32.mxu0 0.0
    %1531 = vmatmul.mubr.f32.gmra.mrb[0].mxu0 %v1464
    %v1532 = vpop.f32.mrb[0].mxu0
    %v1533 = vadd.f32 0.0, %v1532
    %v1534 = vpop.f32.mrb[0].mxu0
    %v1535 = vadd.f32 0.0, %v1534
    %1536 = vdwg.mxu0
    %1538 = vrot.lane.b32.xlu0 %v1433, 32
    %v1539 = vpop.permute.xlu0 %1538
    %v1540 = vsel %vm131, %v1539, 0
    %1542 = vmatprep.subr.mxu0 0.0
    %1543 = vmatpush1.msra.mxu0 %v36
    %1544 = vmatprep.subr.mxu0 0.0
    %1545 = vmatpush1.msra.mxu0 %v37
    %1546 = vmatprep.subr.mxu0 0.0
    %1547 = vmatpush1.msra.mxu0 %v38
    %1548 = vmatprep.subr.mxu0 0.0
    %1549 = vmatpush1.msra.mxu0 %v39
    %1550 = vmatprep.subr.mxu0 0.0
    %1551 = vmatpush1.msra.mxu0 0.0
    %1552 = vmatprep.subr.mxu0 0.0
    %1553 = vmatpush1.msra.mxu0 0.0
    %1554 = vmatprep.subr.mxu0 0.0
    %1555 = vmatpush1.msra.mxu0 0.0
    %1556 = vmatprep.subr.mxu0 0.0
    %1557 = vmatpush1.msra.mxu0 0.0
    %1558 = vmatprep.subr.mxu0 0.0
    %1559 = vmatpush1.msra.mxu0 0.0
    %1560 = vmatprep.subr.mxu0 0.0
    %1561 = vmatpush1.msra.mxu0 0.0
    %1562 = vmatprep.subr.mxu0 0.0
    %1563 = vmatpush1.msra.mxu0 0.0
    %1564 = vmatprep.subr.mxu0 0.0
    %1565 = vmatpush1.msra.mxu0 0.0
    %1566 = vmatprep.subr.mxu0 0.0
    %1567 = vmatpush1.msra.mxu0 0.0
    %1568 = vmatprep.subr.mxu0 0.0
    %1569 = vmatpush1.msra.mxu0 0.0
    %1570 = vmatprep.subr.mxu0 0.0
    %1571 = vmatpush1.msra.mxu0 0.0
    %1572 = vmatprep.subr.mxu0 0.0
    %1573 = vmatpush1.msra.mxu0 0.0
    %1574 = vmatprep.subr.mxu0 0.0
    %1575 = vmatpush1.msra.mxu0 0.0
    %1576 = vmatprep.subr.mxu0 0.0
    %1577 = vmatpush1.msra.mxu0 0.0
    %1578 = vmatprep.subr.mxu0 0.0
    %1579 = vmatpush1.msra.mxu0 0.0
    %1580 = vmatprep.subr.mxu0 0.0
    %1581 = vmatpush1.msra.mxu0 0.0
    %1582 = vmatprep.subr.mxu0 0.0
    %1583 = vmatpush1.msra.mxu0 0.0
    %1584 = vmatprep.subr.mxu0 0.0
    %1585 = vmatpush1.msra.mxu0 0.0
    %1586 = vmatprep.subr.mxu0 0.0
    %1587 = vmatpush1.msra.mxu0 0.0
    %1588 = vmatprep.subr.mxu0 0.0
    %1589 = vmatpush1.msra.mxu0 0.0
    %1590 = vmatprep.subr.mxu0 0.0
    %1591 = vmatpush1.msra.mxu0 0.0
    %1592 = vmatprep.subr.mxu0 0.0
    %1593 = vmatpush1.msra.mxu0 0.0
    %1594 = vmatprep.subr.mxu0 0.0
    %1595 = vmatpush1.msra.mxu0 0.0
    %1596 = vmatprep.subr.mxu0 0.0
    %1597 = vmatpush1.msra.mxu0 0.0
    %1598 = vmatprep.subr.mxu0 0.0
    %1599 = vmatpush1.msra.mxu0 0.0
    %1600 = vmatprep.subr.mxu0 0.0
    %1601 = vmatpush1.msra.mxu0 0.0
    %1602 = vmatprep.subr.mxu0 0.0
    %1603 = vmatpush1.msra.mxu0 0.0
    %1604 = vmatprep.subr.mxu0 0.0
    %1605 = vmatpush1.msra.mxu0 0.0
    %1606 = vmatprep.mubr.f32.mxu0 0.0
    %1607 = vmatmul.mubr.f32.gmra.mrb[0].mxu0 %v1540
    %v1608 = vpop.f32.mrb[0].mxu0
    %v1609 = vadd.f32 0.0, %v1608
    %v1610 = vpop.f32.mrb[0].mxu0
    %1611 = vdwg.mxu0
    %v1612 = vadd.f32 %v1533, %v1609
    %v1613 = vadd.f32 %v1612, %v44
    %v1614 = vxor.u32 %v1613, 2147483648
    %v1615 = vmul.f32 %v1614, 1.442695
    %v1616 = vpow.pop %v1615
    %v1617 = vadd.f32 %v1616, 1.0
    %v1618 = vrcp.pop %v1617
    %v1619 = vmul.f32 1.0, %v1618
    %v1620 = vtanh.pop %v1613
    %v1621 = vmul.f32 %v1619, %v1427
    %1623 = vrot.lane.b32.xlu0 %v1620, 64
    %v1624 = vpop.permute.xlu0 %1623
    %v1626 = vmul.f32 %v1619, %v1624
    %1628 = vrot.lane.b32.xlu0 %v1626, 32
    %v1629 = vpop.permute.xlu0 %1628
    %v1631 = vadd.f32 %v1621, %v1629
    %v1632 = vtanh.pop %v1631
    %1634 = vrot.lane.b32.xlu0 %v1632, 64
    %v1635 = vpop.permute.xlu0 %1634
    %v1637 = vmul.f32 %v1619, %v1635
    %s1638 = scalar_lea.vmem [#allocation2], 14
    %v1639 = vld [vmem:[%s1638] sm:$0x3]
    %v1640 = vadd.f32 %v1639, %v1535
    %v1641 = vxor.u32 %v1640, 2147483648
    %v1642 = vmul.f32 %v1641, 1.442695
    %v1643 = vpow.pop %v1642
    %v1644 = vadd.f32 %v1643, 1.0
    %v1645 = vrcp.pop %v1644
    %v1646 = vmul.f32 1.0, %v1645
    %v1647 = vtanh.pop %v1640
    %v1648 = vmul.f32 %v1646, %v1454
    %1650 = vrot.lane.b32.xlu0 %v1647, 64
    %v1651 = vpop.permute.xlu0 %1650
    %v1653 = vmul.f32 %v1646, %v1651
    %1655 = vrot.lane.b32.xlu0 %v1653, 32
    %v1656 = vpop.permute.xlu0 %1655
    %v1658 = vadd.f32 %v1648, %v1656
    %v1659 = vtanh.pop %v1658
    %1661 = vrot.lane.b32.xlu0 %v1659, 64
    %v1662 = vpop.permute.xlu0 %1661
    %v1664 = vmul.f32 %v1646, %v1662
    %1666 = vrot.lane.b32.xlu0 %v1664, 32
    %v1667 = vpop.permute.xlu0 %1666
    %v1668 = vsel %vm131, %v1667, 0
    %1670 = vmatprep.subr.mxu0 %v29
    %1671 = vmatpush1.msra.mxu0 %v28
    %1672 = vmatprep.subr.mxu0 %v31
    %1673 = vmatpush1.msra.mxu0 %v30
    %1674 = vmatprep.subr.mxu0 %v33
    %1675 = vmatpush1.msra.mxu0 %v32
    %1676 = vmatprep.subr.mxu0 %v35
    %1677 = vmatpush1.msra.mxu0 %v34
    %1678 = vmatprep.subr.mxu0 0.0
    %1679 = vmatpush1.msra.mxu0 0.0
    %1680 = vmatprep.subr.mxu0 0.0
    %1681 = vmatpush1.msra.mxu0 0.0
    %1682 = vmatprep.subr.mxu0 0.0
    %1683 = vmatpush1.msra.mxu0 0.0
    %1684 = vmatprep.subr.mxu0 0.0
    %1685 = vmatpush1.msra.mxu0 0.0
    %1686 = vmatprep.subr.mxu0 0.0
    %1687 = vmatpush1.msra.mxu0 0.0
    %1688 = vmatprep.subr.mxu0 0.0
    %1689 = vmatpush1.msra.mxu0 0.0
    %1690 = vmatprep.subr.mxu0 0.0
    %1691 = vmatpush1.msra.mxu0 0.0
    %1692 = vmatprep.subr.mxu0 0.0
    %1693 = vmatpush1.msra.mxu0 0.0
    %1694 = vmatprep.subr.mxu0 0.0
    %1695 = vmatpush1.msra.mxu0 0.0
    %1696 = vmatprep.subr.mxu0 0.0
    %1697 = vmatpush1.msra.mxu0 0.0
    %1698 = vmatprep.subr.mxu0 0.0
    %1699 = vmatpush1.msra.mxu0 0.0
    %1700 = vmatprep.subr.mxu0 0.0
    %1701 = vmatpush1.msra.mxu0 0.0
    %1702 = vmatprep.subr.mxu0 0.0
    %1703 = vmatpush1.msra.mxu0 0.0
    %1704 = vmatprep.subr.mxu0 0.0
    %1705 = vmatpush1.msra.mxu0 0.0
    %1706 = vmatprep.subr.mxu0 0.0
    %1707 = vmatpush1.msra.mxu0 0.0
    %1708 = vmatprep.subr.mxu0 0.0
    %1709 = vmatpush1.msra.mxu0 0.0
    %1710 = vmatprep.subr.mxu0 0.0
    %1711 = vmatpush1.msra.mxu0 0.0
    %1712 = vmatprep.subr.mxu0 0.0
    %1713 = vmatpush1.msra.mxu0 0.0
    %1714 = vmatprep.subr.mxu0 0.0
    %1715 = vmatpush1.msra.mxu0 0.0
    %1716 = vmatprep.subr.mxu0 0.0
    %1717 = vmatpush1.msra.mxu0 0.0
    %1718 = vmatprep.subr.mxu0 0.0
    %1719 = vmatpush1.msra.mxu0 0.0
    %1720 = vmatprep.subr.mxu0 0.0
    %1721 = vmatpush1.msra.mxu0 0.0
    %1722 = vmatprep.subr.mxu0 0.0
    %1723 = vmatpush1.msra.mxu0 0.0
    %1724 = vmatprep.subr.mxu0 0.0
    %1725 = vmatpush1.msra.mxu0 0.0
    %1726 = vmatprep.subr.mxu0 0.0
    %1727 = vmatpush1.msra.mxu0 0.0
    %1728 = vmatprep.subr.mxu0 0.0
    %1729 = vmatpush1.msra.mxu0 0.0
    %1730 = vmatprep.subr.mxu0 0.0
    %1731 = vmatpush1.msra.mxu0 0.0
    %1732 = vmatprep.subr.mxu0 0.0
    %1733 = vmatpush1.msra.mxu0 0.0
    %1734 = vmatprep.mubr.f32.mxu0 0.0
    %1735 = vmatmul.mubr.f32.gmra.mrb[0].mxu0 %v1668
    %v1736 = vpop.f32.mrb[0].mxu0
    %v1737 = vadd.f32 0.0, %v1736
    %v1738 = vpop.f32.mrb[0].mxu0
    %1739 = vdwg.mxu0
    %1741 = vrot.lane.b32.xlu0 %v1637, 32
    %v1742 = vpop.permute.xlu0 %1741
    %v1743 = vsel %vm131, %v1742, 0
    %1745 = vmatprep.subr.mxu0 0.0
    %1746 = vmatpush1.msra.mxu0 %v36
    %1747 = vmatprep.subr.mxu0 0.0
    %1748 = vmatpush1.msra.mxu0 %v37
    %1749 = vmatprep.subr.mxu0 0.0
    %1750 = vmatpush1.msra.mxu0 %v38
    %1751 = vmatprep.subr.mxu0 0.0
    %1752 = vmatpush1.msra.mxu0 %v39
    %1753 = vmatprep.subr.mxu0 0.0
    %1754 = vmatpush1.msra.mxu0 0.0
    %1755 = vmatprep.subr.mxu0 0.0
    %1756 = vmatpush1.msra.mxu0 0.0
    %1757 = vmatprep.subr.mxu0 0.0
    %1758 = vmatpush1.msra.mxu0 0.0
    %1759 = vmatprep.subr.mxu0 0.0
    %1760 = vmatpush1.msra.mxu0 0.0
    %1761 = vmatprep.subr.mxu0 0.0
    %1762 = vmatpush1.msra.mxu0 0.0
    %1763 = vmatprep.subr.mxu0 0.0
    %1764 = vmatpush1.msra.mxu0 0.0
    %1765 = vmatprep.subr.mxu0 0.0
    %1766 = vmatpush1.msra.mxu0 0.0
    %1767 = vmatprep.subr.mxu0 0.0
    %1768 = vmatpush1.msra.mxu0 0.0
    %1769 = vmatprep.subr.mxu0 0.0
    %1770 = vmatpush1.msra.mxu0 0.0
    %1771 = vmatprep.subr.mxu0 0.0
    %1772 = vmatpush1.msra.mxu0 0.0
    %1773 = vmatprep.subr.mxu0 0.0
    %1774 = vmatpush1.msra.mxu0 0.0
    %1775 = vmatprep.subr.mxu0 0.0
    %1776 = vmatpush1.msra.mxu0 0.0
    %1777 = vmatprep.subr.mxu0 0.0
    %1778 = vmatpush1.msra.mxu0 0.0
    %1779 = vmatprep.subr.mxu0 0.0
    %1780 = vmatpush1.msra.mxu0 0.0
    %1781 = vmatprep.subr.mxu0 0.0
    %1782 = vmatpush1.msra.mxu0 0.0
    %1783 = vmatprep.subr.mxu0 0.0
    %1784 = vmatpush1.msra.mxu0 0.0
    %1785 = vmatprep.subr.mxu0 0.0
    %1786 = vmatpush1.msra.mxu0 0.0
    %1787 = vmatprep.subr.mxu0 0.0
    %1788 = vmatpush1.msra.mxu0 0.0
    %1789 = vmatprep.subr.mxu0 0.0
    %1790 = vmatpush1.msra.mxu0 0.0
    %1791 = vmatprep.subr.mxu0 0.0
    %1792 = vmatpush1.msra.mxu0 0.0
    %1793 = vmatprep.subr.mxu0 0.0
    %1794 = vmatpush1.msra.mxu0 0.0
    %1795 = vmatprep.subr.mxu0 0.0
    %1796 = vmatpush1.msra.mxu0 0.0
    %1797 = vmatprep.subr.mxu0 0.0
    %1798 = vmatpush1.msra.mxu0 0.0
    %1799 = vmatprep.subr.mxu0 0.0
    %1800 = vmatpush1.msra.mxu0 0.0
    %1801 = vmatprep.subr.mxu0 0.0
    %1802 = vmatpush1.msra.mxu0 0.0
    %1803 = vmatprep.subr.mxu0 0.0
    %1804 = vmatpush1.msra.mxu0 0.0
    %1805 = vmatprep.subr.mxu0 0.0
    %1806 = vmatpush1.msra.mxu0 0.0
    %1807 = vmatprep.subr.mxu0 0.0
    %1808 = vmatpush1.msra.mxu0 0.0
    %1809 = vmatprep.mubr.f32.mxu0 0.0
    %1810 = vmatmul.mubr.f32.gmra.mrb[0].mxu0 %v1743
    %v1811 = vpop.f32.mrb[0].mxu0
    %v1812 = vadd.f32 0.0, %v1811
    %v1813 = vpop.f32.mrb[0].mxu0
    %1814 = vdwg.mxu0
    %v1815 = vadd.f32 %v1737, %v1812
    %v1816 = vadd.f32 %v1815, %v44
    %v1817 = vxor.u32 %v1816, 2147483648
    %v1818 = vmul.f32 %v1817, 1.442695
    %v1819 = vpow.pop %v1818
    %v1820 = vadd.f32 %v1819, 1.0
    %v1821 = vrcp.pop %v1820
    %v1822 = vmul.f32 1.0, %v1821
    %v1823 = vtanh.pop %v1816
    %v1824 = vmul.f32 %v1822, %v1631
    %1826 = vrot.lane.b32.xlu0 %v1823, 64
    %v1827 = vpop.permute.xlu0 %1826
    %v1829 = vmul.f32 %v1822, %v1827
    %1831 = vrot.lane.b32.xlu0 %v1829, 32
    %v1832 = vpop.permute.xlu0 %1831
    %v1834 = vadd.f32 %v1824, %v1832
    %v1835 = vtanh.pop %v1834
    %1837 = vrot.lane.b32.xlu0 %v1835, 64
    %v1838 = vpop.permute.xlu0 %1837
    %v1840 = vmul.f32 %v1822, %v1838
    %v1841 = vld [vmem:[%s1 + $0x3] sm:$0x1]
    %v1842 = vld [vmem:[%s1 + $0x4] sm:$0x1]
    %v1843 = vlaneseq
    %v1844 = vshrl.u32 %v1843, 7
    %v1845 = vsub.s32 0, %v1844
    %v1846 = vrot.slane %v1841, %v1845
    %1848 = vrot.lane.b32.xlu0 %v1846, 96
    %v1849 = vpop.permute.xlu0 %1848
    %v1851 = vmul.f32 %v1840, %v1849
    %1853 = vrot.lane.b32.xlu0 %v1851, 32
    %v1854 = vpop.permute.xlu0 %1853
    %vm1856 = vcmask 254976
    %v1857 = vsel %vm1856, %v1854, 0.0
    %1858 = vadd.xlane.f32.xlu0 %v1857
    %v1859 = vpop.xlane.xlu0 %1858
    %v1860 = vlaneseq
    %v1861 = vshrl.u32 %v1860, 7
    %v1862 = vsub.s32 0, %v1861
    %v1863 = vrot.slane %v1842, %v1862
    %v1864 = vadd.f32 %v1859, %v1863
    %vm1865 = vcmask 1024
    %1866 = vst.msk [vmem:[%s3] sm:$0x3] %vm1865, %v1864
    // Predicated region
    $region18: #{tpu_custom_call.1} parent=1 // pred_check
      _
    $region19: #{tpu_custom_call.1} parent=1 // pred_check_branch
      %1868 = sbr.rel (0) target = $region21
    $region20: #{tpu_custom_call.1} parent=1 // pred_region
      _
    $region21: #{tpu_custom_call.1} parent=1 // pred_fallthru
      _
    // Predicated region
    $region22: #{tpu_custom_call.1} parent=1 // pred_check
      _
    $region23: #{tpu_custom_call.1} parent=1 // pred_check_branch
      %1870 = sbr.rel (0) target = $region25
    $region24: #{tpu_custom_call.1} parent=1 // pred_region
      _
    $region25: #{tpu_custom_call.1} parent=1 // pred_fallthru
      _
    %1871 = vsyncpa [#allocation4], 1

</llo_original>
